<compile_context>
chip_gen: v5e
topology: v5e:2x2
jax: 0.10.0
libtpu: 0.0.40
codegen_flags: <defaults>
</compile_context>

<pallas_src>
import math

import numpy as np
import jax
import jax.numpy as jnp
from jax import lax
from jax.experimental import pallas as pl
from jax.experimental.pallas import tpu as pltpu

BIAS = 1e-7
_CLIP = 60.0     # |x| clamp; sigmoid fully saturated (error < 1e-13) for |a|<25
_A_MAX = 25.0    # kernel accuracy / overflow guarantee needs max|a_j| <= ~25


def _cdiv(a, b):
    return -(-a // b)


def _round_up(a, m):
    return _cdiv(a, m) * m


def _unsure_kernel(coef_ref, expand_ref, x_ref, out_ref):
    """coef: (8, L) f32 ; expand: (G, L) f32 0/1 ; x: (TB, G) ; out: (TB, L).

    Lane layout of the output block: lane l = g*(K+1) + k (g = element within
    the row group, k = class) == row-major order of pred.shape + (K+1,).
    """
    x = jnp.clip(x_ref[...].astype(jnp.float32), -_CLIP, _CLIP)
    u0 = jnp.exp(x)                        # exp on the compact tile (EUP), once
    # Replicate each input lane (K+1) times: u[:, g*(K+1)+k] = u0[:, g].
    # expand is 0/1 with exactly one 1 per column -> exact at HIGHEST precision.
    u = jnp.dot(u0, expand_ref[...],
                precision=lax.Precision.HIGHEST,
                preferred_element_type=jnp.float32)
    ena_hi = coef_ref[0:1, :]              # exp(-a_k)         (0 at k == K)
    ena_lo = coef_ref[1:2, :]              # exp(-a_{k-1})     (0 at k == 0)
    c0 = coef_ref[2:3, :]                  # 1 at k == 0 else 0
    c1 = coef_ref[3:4, :]                  # ena_lo - [k>0]*ena_hi
    # s_hi - s_lo fused into a single divide (factored denominator):
    numer = c0 + u * c1
    denom = (1.0 + u * ena_hi) * (1.0 + u * ena_lo)
    out_ref[...] = (numer / denom).astype(out_ref.dtype)


def unsure_data_loss_forward(pred, t, e=None, c=None):
    """JAX/Pallas equivalent of UnsureDataLoss.forward.

    pred: float array (batch, *);  t/e/c: length-K parameter vectors
    returns: pred.shape + (K+1,), dtype = pred.dtype
    """
    t = jnp.asarray(t, jnp.float32)
    K = int(t.shape[0])
    K1 = K + 1
    e = jnp.ones((K,), jnp.float32) if e is None else jnp.asarray(e, jnp.float32)
    c = jnp.zeros((K,), jnp.float32) if c is None else jnp.asarray(c, jnp.float32)

    a = t + jnp.log(e + BIAS) + c                         # (K,)
    # Cheap host-side insurance (skipped when traced under jit): the saturating
    # exp formulation is only exact while |a_j| is well inside the clip window.
    try:
        a_max = float(jnp.max(jnp.abs(a)))
    except Exception:
        a_max = None
    if a_max is not None and a_max > _A_MAX:
        raise ValueError(
            f"UnsureDataLoss Pallas kernel requires max|a_j| <= {_A_MAX}, got "
            f"{a_max} (thresholds too large for the saturating-exp path).")

    ena = jnp.exp(-a)                                     # exp(-a_j), (K,)

    orig_shape = pred.shape
    x_flat = pred.reshape(-1)
    n = int(x_flat.shape[0])

    # Lane group: L = GROUP*K1 must be a multiple of 128 (lane-dense stores).
    # Prefer the largest candidate that also divides n (no padding => no
    # post-kernel tail-slice copy); otherwise fall back to 128 + padding.
    g_min = 128 // math.gcd(K1, 128)
    candidates = [g for g in (128, 64, 32, 16, 8) if g % g_min == 0] or [g_min]
    GROUP = next((g for g in candidates if n % g == 0), candidates[0])
    L = GROUP * K1

    # Per-lane coefficient rows (lane l = g*K1 + k -> value depends on k only).
    zero1 = jnp.zeros((1,), jnp.float32)
    ones_k = jnp.ones((K,), jnp.float32)
    ena_hi_b = jnp.concatenate([ena, zero1])              # (K1,)
    ena_lo_b = jnp.concatenate([zero1, ena])              # (K1,)
    lo_msk_b = jnp.concatenate([zero1, ones_k])           # (K1,)
    c0_b = 1.0 - lo_msk_b
    c1_b = ena_lo_b - lo_msk_b * ena_hi_b
    base = jnp.stack([ena_hi_b, ena_lo_b, c0_b, c1_b], axis=0)   # (4, K1)
    coef = jnp.concatenate([jnp.tile(base, (1, GROUP)),
                            jnp.zeros((4, L), jnp.float32)], axis=0)  # (8, L)

    # Constant 0/1 expansion matrix: expand[g, g*K1 + k] = 1.
    expand = jnp.asarray(
        np.kron(np.eye(GROUP, dtype=np.float32), np.ones((1, K1), np.float32)))

    n_pad = _round_up(n, GROUP)
    if n_pad != n:                      # pad only when no candidate divides n
        x_flat = jnp.pad(x_flat, (0, n_pad - n))
    rows = n_pad // GROUP
    x2d = x_flat.reshape(rows, GROUP)

    # Generation-aware row-tile size from the physical VMEM capacity.
    isize = jnp.dtype(pred.dtype).itemsize
    fixed = 2 * (8 + GROUP) * L * 4                       # coef + expand (x2 bufs)
    per_row = 2 * (GROUP + L) * isize                     # double-buffered x / out
    per_row += (2 * GROUP + 8 * L) * 4                    # generous f32 temporaries
    try:
        vmem_cap = int(pltpu.get_tpu_info().vmem_capacity_bytes)
    except Exception:
        vmem_cap = 64 * 1024 * 1024                       # conservative fallback
    vmem_limit = min((vmem_cap * 3) // 4, 64 * 1024 * 1024)   # 48 MiB v7x, 64 MiB else
    budget = max(vmem_limit - fixed - (4 << 20), 2 << 20)
    tb = max(8, min((budget // per_row) // 8 * 8, 8192))
    # Keep >= ~4 grid steps where the problem allows it: amortizes per-step
    # overhead and lets "parallel" shard across v7x's two TensorCores.
    tb = min(tb, max(8, _round_up(_cdiv(rows, 4), 8)))
    grid = (_cdiv(rows, tb),)

    out2d = pl.pallas_call(
        _unsure_kernel,
        out_shape=jax.ShapeDtypeStruct((rows, L), pred.dtype),
        grid=grid,
        in_specs=[
            pl.BlockSpec((8, L), lambda i: (0, 0)),        # coef   (fetched once)
            pl.BlockSpec((GROUP, L), lambda i: (0, 0)),    # expand (fetched once)
            pl.BlockSpec((tb, GROUP), lambda i: (i, 0)),   # x row-tile
        ],
        out_specs=pl.BlockSpec((tb, L), lambda i: (i, 0)),
        compiler_params=pltpu.CompilerParams(
            dimension_semantics=("parallel",),
            vmem_limit_bytes=int(vmem_limit),
        ),
    )(coef, expand, x2d)

    # (rows, GROUP*K1) -> (rows*GROUP, K1): free reshape (same row-major order).
    out = out2d.reshape(rows * GROUP, K1)
    if n_pad != n:
        out = out[:n]
    return out.reshape(orig_shape + (K1,))


def _reference_forward(pred, t, e=None, c=None):
    """Pure-JAX reference mirroring the PyTorch code, for verification."""
    t = jnp.asarray(t, jnp.float32)
    K = int(t.shape[0])
    e = jnp.ones((K,), jnp.float32) if e is None else jnp.asarray(e, jnp.float32)
    c = jnp.zeros((K,), jnp.float32) if c is None else jnp.asarray(c, jnp.float32)
    s = [jax.nn.sigmoid(-pred + t[j] + jnp.log(e[j] + BIAS) + c[j]) for j in range(K)]
    confids = [s[0]]
    for i in range(1, K):
        confids.append(s[i] - s[i - 1])
    confids.append(1.0 - s[K - 1])
    return jnp.stack(confids, axis=-1)


if __name__ == "__main__":
    key = jax.random.PRNGKey(0)
    k0, k1 = jax.random.split(key)

    # Test 1: aligned size (GROUP=128 path, multi-step grid), default e/c.
    pred = jax.random.normal(k0, (2, 8, 128), dtype=jnp.float32) * 2.0
    t = jnp.array([0.5, 1.0, 1.5], dtype=jnp.float32)
    out = jax.block_until_ready(unsure_data_loss_forward(pred, t))
    ref = _reference_forward(pred, t)
    assert out.shape == pred.shape + (4,), out.shape
    err = float(jnp.max(jnp.abs(out - ref)))
    assert jnp.allclose(out, ref, atol=1e-5, rtol=1e-5), err

    # Test 2: non-default e/c, extreme inputs (clip/saturation path) and a size
    # that is not a multiple of any lane group (padding + ragged tile + slice).
    e = jnp.array([2.0, 0.5, 1.0], dtype=jnp.float32)
    c = jnp.array([0.3, -0.1, 0.0], dtype=jnp.float32)
    pred2 = jnp.linspace(-120.0, 120.0, 2 * 7 * 13, dtype=jnp.float32).reshape(2, 7, 13)
    out2 = jax.block_until_ready(unsure_data_loss_forward(pred2, t, e, c))
    ref2 = _reference_forward(pred2, t, e, c)
    assert out2.shape == pred2.shape + (4,), out2.shape
    assert bool(jnp.all(jnp.isfinite(out2)))
    err2 = float(jnp.max(jnp.abs(out2 - ref2)))
    assert jnp.allclose(out2, ref2, atol=1e-5, rtol=1e-5), err2

    # Test 3: size divisible by 64 but not 128 -> adaptive GROUP=64, no padding.
    pred3 = jax.random.normal(k1, (3, 64), dtype=jnp.float32)
    out3 = jax.block_until_ready(unsure_data_loss_forward(pred3, t, e, c))
    ref3 = _reference_forward(pred3, t, e, c)
    assert out3.shape == pred3.shape + (4,), out3.shape
    err3 = float(jnp.max(jnp.abs(out3 - ref3)))
    assert jnp.allclose(out3, ref3, atol=1e-5, rtol=1e-5), err3

    print("KERNEL_OK")
</pallas_src>

<mosaic_0001>
module attributes {stable_mosaic.version = 11 : i64} {
  func.func @_unsure_kernel(%arg0: i32, %arg1: memref<8x512xf32, #tpu.memory_space<vmem>>, %arg2: memref<128x512xf32, #tpu.memory_space<vmem>>, %arg3: memref<8x128xf32, #tpu.memory_space<vmem>>, %arg4: memref<8x512xf32, #tpu.memory_space<vmem>>) attributes {dimension_semantics = [#tpu.dimension_semantics<parallel>], iteration_bounds = array<i64: 2>, scalar_prefetch = 0 : i64, scratch_operands = 0 : i64, tpu.core_type = #tpu.core_type<tc>, window_params = [{pipeline_mode = #tpu.pipeline_mode<synchronous>, transform_indices = @transform_0, window_bounds = array<i64: 8, 512>}, {pipeline_mode = #tpu.pipeline_mode<synchronous>, transform_indices = @transform_1, window_bounds = array<i64: 128, 512>}, {transform_indices = @transform_2, window_bounds = array<i64: 8, 128>}, {transform_indices = @transform_3, window_bounds = array<i64: 8, 512>}]} {
    %c0 = arith.constant 0 : index
    %c0_0 = arith.constant 0 : index
    %0 = vector.load %arg3[%c0, %c0_0] : memref<8x128xf32, #tpu.memory_space<vmem>>, vector<8x128xf32>
    %cst = arith.constant -6.000000e+01 : f32
    %cst_1 = arith.constant 6.000000e+01 : f32
    %1 = vector.broadcast %cst : f32 to vector<8x128xf32>
    %2 = arith.maximumf %1, %0 : vector<8x128xf32>
    %3 = vector.broadcast %cst_1 : f32 to vector<8x128xf32>
    %4 = arith.minimumf %3, %2 : vector<8x128xf32>
    %5 = math.exp %4 : vector<8x128xf32>
    %c0_2 = arith.constant 0 : index
    %c0_3 = arith.constant 0 : index
    %6 = vector.load %arg2[%c0_2, %c0_3] : memref<128x512xf32, #tpu.memory_space<vmem>>, vector<128x512xf32>
    %cst_4 = arith.constant dense<0.000000e+00> : vector<8x512xf32>
    %7 = tpu.matmul %5, %6, %cst_4 {dimension_numbers = #tpu.dot_dimension_numbers<[1], [0], [0], [1], [0, 0, 1, 1], [], []>, precision = #tpu.contract_precision<fp32>} : vector<8x128xf32>, vector<128x512xf32>, vector<8x512xf32> -> vector<8x512xf32>
    %c0_5 = arith.constant 0 : index
    %c0_6 = arith.constant 0 : index
    %8 = vector.load %arg1[%c0_5, %c0_6] : memref<8x512xf32, #tpu.memory_space<vmem>>, vector<1x512xf32>
    %c1 = arith.constant 1 : index
    %c0_7 = arith.constant 0 : index
    %9 = vector.load %arg1[%c1, %c0_7] : memref<8x512xf32, #tpu.memory_space<vmem>>, vector<1x512xf32>
    %c2 = arith.constant 2 : index
    %c0_8 = arith.constant 0 : index
    %10 = vector.load %arg1[%c2, %c0_8] : memref<8x512xf32, #tpu.memory_space<vmem>>, vector<1x512xf32>
    %c3 = arith.constant 3 : index
    %c0_9 = arith.constant 0 : index
    %11 = vector.load %arg1[%c3, %c0_9] : memref<8x512xf32, #tpu.memory_space<vmem>>, vector<1x512xf32>
    %12 = vector.broadcast %11 : vector<1x512xf32> to vector<8x512xf32>
    %13 = arith.mulf %7, %12 : vector<8x512xf32>
    %14 = vector.broadcast %10 : vector<1x512xf32> to vector<8x512xf32>
    %15 = arith.addf %14, %13 : vector<8x512xf32>
    %16 = vector.broadcast %8 : vector<1x512xf32> to vector<8x512xf32>
    %17 = arith.mulf %7, %16 : vector<8x512xf32>
    %cst_10 = arith.constant 1.000000e+00 : f32
    %18 = vector.broadcast %cst_10 : f32 to vector<8x512xf32>
    %19 = arith.addf %18, %17 : vector<8x512xf32>
    %20 = vector.broadcast %9 : vector<1x512xf32> to vector<8x512xf32>
    %21 = arith.mulf %7, %20 : vector<8x512xf32>
    %cst_11 = arith.constant 1.000000e+00 : f32
    %22 = vector.broadcast %cst_11 : f32 to vector<8x512xf32>
    %23 = arith.addf %22, %21 : vector<8x512xf32>
    %24 = arith.mulf %19, %23 : vector<8x512xf32>
    %25 = arith.divf %15, %24 : vector<8x512xf32>
    %c0_12 = arith.constant 0 : index
    %c0_13 = arith.constant 0 : index
    %26 = vector.load %arg4[%c0_12, %c0_13] : memref<8x512xf32, #tpu.memory_space<vmem>>, vector<8x512xf32>
    tpu.vector_store %arg4[%c0_12, %c0_13], %25 {strides = array<i32>} : memref<8x512xf32, #tpu.memory_space<vmem>>, vector<8x512xf32>,
    return
  }
  func.func @transform_0(%arg0: i32) -> (i32, i32) {
    %c0_i32 = arith.constant 0 : i32
    %c0_i32_0 = arith.constant 0 : i32
    %c0_i32_1 = arith.constant 0 : i32
    return %c0_i32, %c0_i32_0 : i32, i32
  }
  func.func @transform_1(%arg0: i32) -> (i32, i32) {
    %c0_i32 = arith.constant 0 : i32
    %c0_i32_0 = arith.constant 0 : i32
    %c0_i32_1 = arith.constant 0 : i32
    return %c0_i32, %c0_i32_0 : i32, i32
  }
  func.func @transform_2(%arg0: i32) -> (i32, i32) {
    %c0_i32 = arith.constant 0 : i32
    %c0_i32_0 = arith.constant 0 : i32
    return %arg0, %c0_i32 : i32, i32
  }
  func.func @transform_3(%arg0: i32) -> (i32, i32) {
    %c0_i32 = arith.constant 0 : i32
    %c0_i32_0 = arith.constant 0 : i32
    return %arg0, %c0_i32 : i32, i32
  }
}

</mosaic_0001>

<llo_original>
// kernel: tpu_custom_call.1
$region0: #{tpu_custom_call.1}
  #allocation0 [shape = 'u32[]', space=smem, size = 0x4, offset = 0x4, fixed_abs, tag = 'smem constant byte address 0x4 - core index']
  #allocation1 [shape = 'u32[72,128]{1,0:T(1,128)}', space=vmem, size = 0x9000, scoped, tag = 'internal scratch']
  %s0 = inlined_call_operand.hbm [shape: f32[8,512], index: 0, kind: input, shape index: {}]
  %s1 = inlined_call_operand.hbm [shape: f32[128,512], index: 1, kind: input, shape index: {}]
  %s2 = inlined_call_operand.hbm [shape: f32[16,128], index: 2, kind: input, shape index: {}]
  %s3 = inlined_call_operand.hbm [shape: f32[16,512], index: 3, kind: output, shape index: {}]
  %s4 = sld [smem:[#allocation0]]
  $region57: #{tpu_custom_call.1} parent=0
    _
  %s6 = ssub.s32 1, %s4
  %s7 = scalar_select 0, %s6, %s4
  $region1: #{tpu_custom_call.1} parent=0
    #allocation2 [shape = 'u8[16384]{0}', space=vmem, size = 0x4000, scoped, tag = 'input window, operand 0, single buffered']
    #allocation3 [shape = 's32[2]{0}', space=sflag, size = 0x8, scoped, tag = 'scoped memory for tpu_custom_call.1']
    #allocation4 [shape = 's32[2]{0}', space=sflag, size = 0x8, scoped, tag = 'scoped memory for tpu_custom_call.1']
    #allocation5 [shape = 'u8[262144]{0}', space=vmem, size = 0x40000, scoped, tag = 'input window, operand 1, single buffered']
    #allocation6 [shape = 's32[1]{0}', space=sflag, size = 0x4, scoped, tag = 'scoped memory for tpu_custom_call.1']
    #allocation7 [shape = 'u8[8192]{0}', space=vmem, size = 0x2000, scoped, tag = 'input window, operand 2']
    #allocation8 [shape = 'u8[32768]{0}', space=vmem, size = 0x8000, scoped, tag = 'output window, operand 0']
    %8 = vsyncpa [#allocation3], 0
    %9 = vsyncpa [#allocation6], 0
    %10 = vsyncpa [#allocation4], 0
    %s11 = scalar_lea.sflag [#allocation4], 1
    %12 = vsyncpa %s11, 0
    loop: start=0, step=1, limit=4
    $region2: #{tpu_custom_call.1} parent=1 // loop_pre_header
      _
    $region3: #{tpu_custom_call.1} parent=1 // loop_header
      %s14 = sphi 0, %s18
      %p15 = scmp.ge.s32.totalorder %s14, 4
      %s22 = sphi 0, %s22
      %s24 = sphi 0, %s22
      %s25 = sphi 0, %s24
      %s39 = sphi 0, %s25
      %s43 = sphi 0, %s43
      %s45 = sphi 0, %s43
      %s46 = sphi 0, %s45
      %s60 = sphi 0, %s46
      %s66 = sphi 0, %s68
      %s69 = sphi 0, %s66
      %s70 = sphi 0, %s69
      %s86 = sphi 0, %s70
      %s92 = sphi 0, %s94
      %s95 = sphi 0, %s92
      %s96 = sphi 0, %s95
      %s112 = sphi 0, %s96
    $region4: #{tpu_custom_call.1} parent=1 // loop_header_branch
      %17 = sbr.rel (%p15) target = $region8
    $region5: #{tpu_custom_call.1} parent=1 // loop_body
      %s19 = ssub.s32 %s14, 1
      %s20 = ssub.s32 %s14, 2
      %s21 = sadd.s32 %s14, 1
      %s23 = sadd.s32 %s22, 1
      %p26 = scmp.eq.s32.totalorder %s14, 1
      %p27 = scmp.ne.s32.totalorder %s22, %s24
      %p28 = scmp.eq.s32.totalorder %s14, 0
      %p29 = por %p27, %p28
      %p30 = scmp.ne.s32.totalorder %s22, %s24
      %p31 = scmp.eq.s32.totalorder %s19, 1
      %p32 = por %p30, %p31
      %p33 = scmp.ne.s32.totalorder %s24, %s25
      %p34 = scmp.eq.s32.totalorder %s19, 0
      %p35 = por %p33, %p34
      %p36 = scmp.ne.s32.totalorder %s24, %s25
      %p37 = scmp.eq.s32.totalorder %s20, 1
      %p38 = por %p36, %p37
      %p40 = scmp.ne.s32.totalorder %s25, %s39
      %p41 = scmp.eq.s32.totalorder %s20, 0
      %p42 = por %p40, %p41
      %s44 = sadd.s32 %s43, 1
      %p47 = scmp.eq.s32.totalorder %s14, 1
      %p48 = scmp.ne.s32.totalorder %s43, %s45
      %p49 = scmp.eq.s32.totalorder %s14, 0
      %p50 = por %p48, %p49
      %p51 = scmp.ne.s32.totalorder %s43, %s45
      %p52 = scmp.eq.s32.totalorder %s19, 1
      %p53 = por %p51, %p52
      %p54 = scmp.ne.s32.totalorder %s45, %s46
      %p55 = scmp.eq.s32.totalorder %s19, 0
      %p56 = por %p54, %p55
      %p57 = scmp.ne.s32.totalorder %s45, %s46
      %p58 = scmp.eq.s32.totalorder %s20, 1
      %p59 = por %p57, %p58
      %p61 = scmp.ne.s32.totalorder %s46, %s60
      %p62 = scmp.eq.s32.totalorder %s20, 0
      %p63 = por %p61, %p62
      %s64 = ssub.s32 %s14, %s21
      %p65 = scmp.eq.s32.totalorder %s64, 0
      %s67 = sadd.s32 %s66, 1
      %s68 = scalar_select %p65, %s66, %s67
      %p71 = pneg %p65
      %p72 = scmp.eq.s32.totalorder %s14, 1
      %p73 = por %p71, %p72
      %p74 = scmp.ne.s32.totalorder %s66, %s69
      %p75 = scmp.eq.s32.totalorder %s14, 0
      %p76 = por %p74, %p75
      %p77 = scmp.ne.s32.totalorder %s66, %s69
      %p78 = scmp.eq.s32.totalorder %s19, 1
      %p79 = por %p77, %p78
      %p80 = scmp.ne.s32.totalorder %s69, %s70
      %p81 = scmp.eq.s32.totalorder %s19, 0
      %p82 = por %p80, %p81
      %p83 = scmp.ne.s32.totalorder %s69, %s70
      %p84 = scmp.eq.s32.totalorder %s20, 1
      %p85 = por %p83, %p84
      %p87 = scmp.ne.s32.totalorder %s70, %s86
      %p88 = scmp.eq.s32.totalorder %s20, 0
      %p89 = por %p87, %p88
      %s90 = ssub.s32 %s14, %s21
      %p91 = scmp.eq.s32.totalorder %s90, 0
      %s93 = sadd.s32 %s92, 1
      %s94 = scalar_select %p91, %s92, %s93
      %p97 = pneg %p91
      %p98 = scmp.eq.s32.totalorder %s14, 1
      %p99 = por %p97, %p98
      %p100 = scmp.ne.s32.totalorder %s92, %s95
      %p101 = scmp.eq.s32.totalorder %s14, 0
      %p102 = por %p100, %p101
      %p103 = scmp.ne.s32.totalorder %s92, %s95
      %p104 = scmp.eq.s32.totalorder %s19, 1
      %p105 = por %p103, %p104
      %p106 = scmp.ne.s32.totalorder %s95, %s96
      %p107 = scmp.eq.s32.totalorder %s19, 0
      %p108 = por %p106, %p107
      %p109 = scmp.ne.s32.totalorder %s95, %s96
      %p110 = scmp.eq.s32.totalorder %s20, 1
      %p111 = por %p109, %p110
      %p113 = scmp.ne.s32.totalorder %s96, %s112
      %p114 = scmp.eq.s32.totalorder %s20, 0
      %p115 = por %p113, %p114
      %p116 = scmp.le.s32.totalorder 1, %s14
      %p117 = scmp.lt.s32.totalorder %s14, 3
      %p118 = pnand %p116, %p117
      %p119 = pneg %p118
      // Predicated region
      $region9: #{tpu_custom_call.1} parent=5 // pred_check
        _
      $region10: #{tpu_custom_call.1} parent=5 // pred_check_branch
        %121 = sbr.rel (%p118) target = $region12
      $region11: #{tpu_custom_call.1} parent=5 // pred_region
        %s122 = ssub.s32 %s14, 1
        // Predicated region
        $region13: #{tpu_custom_call.1} parent=11 // pred_check
          %p123 = pneg %p35
        $region14: #{tpu_custom_call.1} parent=11 // pred_check_branch
          %125 = sbr.rel (%p123) target = $region16
        $region15: #{tpu_custom_call.1} parent=11 // pred_region
          %127 = vsyncadd [#allocation3], 0
          %s129 = sshll.u32 %s0, 4
          %s130 = int_to_ptr.hbm [resolvable:$true] %s129
          %s131 = sshll.u32 [#allocation2], 4
          %s132 = int_to_ptr.vmem [resolvable:$true] %s131
          %134 = dma.hbm_to_vmem [thread:$0]  %s130, 512, %s132, [#allocation3]
        $region16: #{tpu_custom_call.1} parent=11 // pred_fallthru
          _
        // Predicated region
        $region17: #{tpu_custom_call.1} parent=11 // pred_check
          %p135 = pneg %p56
        $region18: #{tpu_custom_call.1} parent=11 // pred_check_branch
          %137 = sbr.rel (%p135) target = $region20
        $region19: #{tpu_custom_call.1} parent=11 // pred_region
          %139 = vsyncadd [#allocation6], 0
          %s140 = sshll.u32 %s1, 4
          %s141 = int_to_ptr.hbm [resolvable:$true] %s140
          %s142 = sshll.u32 [#allocation5], 4
          %s143 = int_to_ptr.vmem [resolvable:$true] %s142
          %148 = dma.hbm_to_vmem [thread:$0]  %s141, 8192, %s143, [#allocation6], 512, 512, 32
        $region20: #{tpu_custom_call.1} parent=11 // pred_fallthru
          _
      $region12: #{tpu_custom_call.1} parent=5 // pred_fallthru
        _
      %p149 = scmp.lt.s32.totalorder %s14, 2
      // Predicated region
      $region21: #{tpu_custom_call.1} parent=5 // pred_check
        %p150 = pneg %p149
      $region22: #{tpu_custom_call.1} parent=5 // pred_check_branch
        %152 = sbr.rel (%p150) target = $region24
      $region23: #{tpu_custom_call.1} parent=5 // pred_region
        // Predicated region
        $region25: #{tpu_custom_call.1} parent=23 // pred_check
          %p153 = pneg %p76
        $region26: #{tpu_custom_call.1} parent=23 // pred_check_branch
          %155 = sbr.rel (%p153) target = $region28
        $region27: #{tpu_custom_call.1} parent=23 // pred_region
          %s156 = sand.u32 %s14, 1
          %s157 = scalar_lea.sflag [#allocation3], %s156
          %s158 = sand.u32 %s66, 1
          %s159 = smul.addr %s158, 8
          %s160 = scalar_lea.vmem [#allocation7], %s159
          %162 = vsyncadd %s157, 0
          %s163 = smul.addr %s14, 8
          %s164 = scalar_lea.hbm %s2, %s163
          %s166 = sshll.u32 %s164, 4
          %s167 = int_to_ptr.hbm [resolvable:$true] %s166
          %s168 = sshll.u32 %s160, 4
          %s169 = int_to_ptr.vmem [resolvable:$true] %s168
          %171 = dma.hbm_to_vmem [thread:$0]  %s167, 128, %s169, %s157
        $region28: #{tpu_custom_call.1} parent=23 // pred_fallthru
          _
      $region24: #{tpu_custom_call.1} parent=5 // pred_fallthru
        _
      %p172 = scmp.le.s32.totalorder 1, %s14
      %p173 = scmp.lt.s32.totalorder %s14, 3
      %p174 = pnand %p172, %p173
      %p175 = pneg %p174
      // Predicated region
      $region29: #{tpu_custom_call.1} parent=5 // pred_check
        _
      $region30: #{tpu_custom_call.1} parent=5 // pred_check_branch
        %177 = sbr.rel (%p174) target = $region32
      $region31: #{tpu_custom_call.1} parent=5 // pred_region
        %s178 = ssub.s32 %s14, 1
        // Predicated region
        $region33: #{tpu_custom_call.1} parent=31 // pred_check
          %p179 = pneg %p35
        $region34: #{tpu_custom_call.1} parent=31 // pred_check_branch
          %181 = sbr.rel (%p179) target = $region36
        $region35: #{tpu_custom_call.1} parent=31 // pred_region
          %183 = dma.done [#allocation3], 512
        $region36: #{tpu_custom_call.1} parent=31 // pred_fallthru
          _
        // Predicated region
        $region37: #{tpu_custom_call.1} parent=31 // pred_check
          %p184 = pneg %p56
        $region38: #{tpu_custom_call.1} parent=31 // pred_check_branch
          %186 = sbr.rel (%p184) target = $region40
        $region39: #{tpu_custom_call.1} parent=31 // pred_region
          %188 = dma.done [#allocation6], 8192
        $region40: #{tpu_custom_call.1} parent=31 // pred_fallthru
          _
        %s189 = sand.u32 %s19, 1
        %s190 = scalar_lea.sflag [#allocation3], %s189
        %s191 = sand.u32 %s69, 1
        %s192 = smul.addr %s191, 8
        %s193 = scalar_lea.vmem [#allocation7], %s192
        // Predicated region
        $region41: #{tpu_custom_call.1} parent=31 // pred_check
          %p194 = pneg %p82
        $region42: #{tpu_custom_call.1} parent=31 // pred_check_branch
          %196 = sbr.rel (%p194) target = $region44
        $region43: #{tpu_custom_call.1} parent=31 // pred_region
          %198 = dma.done %s190, 128
        $region44: #{tpu_custom_call.1} parent=31 // pred_fallthru
          _
        %p199 = pneg %p35
        %p200 = pneg %p32
        %p201 = pneg %p56
        %p202 = pneg %p53
        %s203 = sand.u32 %s19, 1
        %s204 = scalar_lea.sflag [#allocation3], %s203
        %s205 = sand.u32 %s69, 1
        %s206 = smul.addr %s205, 8
        %s207 = scalar_lea.vmem [#allocation7], %s206
        %p208 = pneg %p82
        %p209 = pneg %p79
        %p210 = pneg %p108
        %p211 = pneg %p105
        %s212 = sand.u32 %s95, 1
        %s213 = scalar_lea.sflag [#allocation4], %s212
        %s214 = sand.u32 %s95, 1
        %s215 = smul.addr %s214, 32
        %s216 = scalar_lea.vmem [#allocation8], %s215
        %v217 = vld [vmem:[%s193] sm:$0xff]
        %v218 = vmax.f32 %v217, -60.0
        %v219 = vmin.f32 %v218, 60.0
        %v220 = vmul.f32 %v219, 1.442695
        %v221 = vpow.pop %v220
        %v222 = vld [vmem:[#allocation5] sm:$0xff]
        %v223 = vld [vmem:[#allocation5 + $0x8] sm:$0xff]
        %v224 = vld [vmem:[#allocation5 + $0x10] sm:$0xff]
        %v225 = vld [vmem:[#allocation5 + $0x18] sm:$0xff]
        %v226 = vld [vmem:[#allocation5 + $0x20] sm:$0xff]
        %v227 = vld [vmem:[#allocation5 + $0x28] sm:$0xff]
        %v228 = vld [vmem:[#allocation5 + $0x30] sm:$0xff]
        %v229 = vld [vmem:[#allocation5 + $0x38] sm:$0xff]
        %v230 = vld [vmem:[#allocation5 + $0x40] sm:$0xff]
        %v231 = vld [vmem:[#allocation5 + $0x48] sm:$0xff]
        %v232 = vld [vmem:[#allocation5 + $0x50] sm:$0xff]
        %v233 = vld [vmem:[#allocation5 + $0x58] sm:$0xff]
        %v234 = vld [vmem:[#allocation5 + $0x60] sm:$0xff]
        %v235 = vld [vmem:[#allocation5 + $0x68] sm:$0xff]
        %v236 = vld [vmem:[#allocation5 + $0x70] sm:$0xff]
        %v237 = vld [vmem:[#allocation5 + $0x78] sm:$0xff]
        %v238 = vld [vmem:[#allocation5 + $0x80] sm:$0xff]
        %v239 = vld [vmem:[#allocation5 + $0x88] sm:$0xff]
        %v240 = vld [vmem:[#allocation5 + $0x90] sm:$0xff]
        %v241 = vld [vmem:[#allocation5 + $0x98] sm:$0xff]
        %v242 = vld [vmem:[#allocation5 + $0xa0] sm:$0xff]
        %v243 = vld [vmem:[#allocation5 + $0xa8] sm:$0xff]
        %v244 = vld [vmem:[#allocation5 + $0xb0] sm:$0xff]
        %v245 = vld [vmem:[#allocation5 + $0xb8] sm:$0xff]
        %v246 = vld [vmem:[#allocation5 + $0xc0] sm:$0xff]
        %v247 = vld [vmem:[#allocation5 + $0xc8] sm:$0xff]
        %v248 = vld [vmem:[#allocation5 + $0xd0] sm:$0xff]
        %v249 = vld [vmem:[#allocation5 + $0xd8] sm:$0xff]
        %v250 = vld [vmem:[#allocation5 + $0xe0] sm:$0xff]
        %v251 = vld [vmem:[#allocation5 + $0xe8] sm:$0xff]
        %v252 = vld [vmem:[#allocation5 + $0xf0] sm:$0xff]
        %v253 = vld [vmem:[#allocation5 + $0xf8] sm:$0xff]
        %v254 = vld [vmem:[#allocation5 + $0x100] sm:$0xff]
        %v255 = vld [vmem:[#allocation5 + $0x108] sm:$0xff]
        %v256 = vld [vmem:[#allocation5 + $0x110] sm:$0xff]
        %v257 = vld [vmem:[#allocation5 + $0x118] sm:$0xff]
        %v258 = vld [vmem:[#allocation5 + $0x120] sm:$0xff]
        %v259 = vld [vmem:[#allocation5 + $0x128] sm:$0xff]
        %v260 = vld [vmem:[#allocation5 + $0x130] sm:$0xff]
        %v261 = vld [vmem:[#allocation5 + $0x138] sm:$0xff]
        %v262 = vld [vmem:[#allocation5 + $0x140] sm:$0xff]
        %v263 = vld [vmem:[#allocation5 + $0x148] sm:$0xff]
        %v264 = vld [vmem:[#allocation5 + $0x150] sm:$0xff]
        %v265 = vld [vmem:[#allocation5 + $0x158] sm:$0xff]
        %v266 = vld [vmem:[#allocation5 + $0x160] sm:$0xff]
        %v267 = vld [vmem:[#allocation5 + $0x168] sm:$0xff]
        %v268 = vld [vmem:[#allocation5 + $0x170] sm:$0xff]
        %v269 = vld [vmem:[#allocation5 + $0x178] sm:$0xff]
        %v270 = vld [vmem:[#allocation5 + $0x180] sm:$0xff]
        %v271 = vld [vmem:[#allocation5 + $0x188] sm:$0xff]
        %v272 = vld [vmem:[#allocation5 + $0x190] sm:$0xff]
        %v273 = vld [vmem:[#allocation5 + $0x198] sm:$0xff]
        %v274 = vld [vmem:[#allocation5 + $0x1a0] sm:$0xff]
        %v275 = vld [vmem:[#allocation5 + $0x1a8] sm:$0xff]
        %v276 = vld [vmem:[#allocation5 + $0x1b0] sm:$0xff]
        %v277 = vld [vmem:[#allocation5 + $0x1b8] sm:$0xff]
        %v278 = vld [vmem:[#allocation5 + $0x1c0] sm:$0xff]
        %v279 = vld [vmem:[#allocation5 + $0x1c8] sm:$0xff]
        %v280 = vld [vmem:[#allocation5 + $0x1d0] sm:$0xff]
        %v281 = vld [vmem:[#allocation5 + $0x1d8] sm:$0xff]
        %v282 = vld [vmem:[#allocation5 + $0x1e0] sm:$0xff]
        %v283 = vld [vmem:[#allocation5 + $0x1e8] sm:$0xff]
        %v284 = vld [vmem:[#allocation5 + $0x1f0] sm:$0xff]
        %v285 = vld [vmem:[#allocation5 + $0x1f8] sm:$0xff]
        %v286 = vand.u32 %v282, 4294901760
        %287 = vmatpush.msra.mxu0 %v286
        %v288 = vand.u32 %v278, 4294901760
        %289 = vmatpush.msra.mxu0 %v288
        %v290 = vand.u32 %v274, 4294901760
        %291 = vmatpush.msra.mxu0 %v290
        %v292 = vand.u32 %v270, 4294901760
        %293 = vmatpush.msra.mxu0 %v292
        %v294 = vand.u32 %v266, 4294901760
        %295 = vmatpush.msra.mxu0 %v294
        %v296 = vand.u32 %v262, 4294901760
        %297 = vmatpush.msra.mxu0 %v296
        %v298 = vand.u32 %v258, 4294901760
        %299 = vmatpush.msra.mxu0 %v298
        %v300 = vand.u32 %v254, 4294901760
        %301 = vmatpush.msra.mxu0 %v300
        %v302 = vand.u32 %v250, 4294901760
        %303 = vmatpush.msra.mxu0 %v302
        %v304 = vand.u32 %v246, 4294901760
        %305 = vmatpush.msra.mxu0 %v304
        %v306 = vand.u32 %v242, 4294901760
        %307 = vmatpush.msra.mxu0 %v306
        %v308 = vand.u32 %v238, 4294901760
        %309 = vmatpush.msra.mxu0 %v308
        %v310 = vand.u32 %v234, 4294901760
        %311 = vmatpush.msra.mxu0 %v310
        %v312 = vand.u32 %v230, 4294901760
        %313 = vmatpush.msra.mxu0 %v312
        %v314 = vand.u32 %v226, 4294901760
        %315 = vmatpush.msra.mxu0 %v314
        %v316 = vand.u32 %v222, 4294901760
        %317 = vmatpush.msra.mxu0 %v316
        %v318 = vand.u32 %v221, 4294901760
        %v319 = vsub.f32 %v221, %v318
        %v320 = vand.u32 %v319, 4294901760
        %v321 = vsub.f32 %v319, %v320
        %v322 = vand.u32 %v321, 4294901760
        %323 = vmatmul.f32.gmra.mxu0 %v322
        %v324 = vpop.f32.mrf.mxu0
        %v325 = vadd.f32 0.0, %v324
        %326 = vdwg.mxu0
        %v327 = vand.u32 %v282, 4294901760
        %v328 = vsub.f32 %v282, %v327
        %v329 = vand.u32 %v328, 4294901760
        %v330 = vsub.f32 %v328, %v329
        %v331 = vand.u32 %v330, 4294901760
        %332 = vmatpush.msra.mxu0 %v331
        %v333 = vand.u32 %v278, 4294901760
        %v334 = vsub.f32 %v278, %v333
        %v335 = vand.u32 %v334, 4294901760
        %v336 = vsub.f32 %v334, %v335
        %v337 = vand.u32 %v336, 4294901760
        %338 = vmatpush.msra.mxu0 %v337
        %v339 = vand.u32 %v274, 4294901760
        %v340 = vsub.f32 %v274, %v339
        %v341 = vand.u32 %v340, 4294901760
        %v342 = vsub.f32 %v340, %v341
        %v343 = vand.u32 %v342, 4294901760
        %344 = vmatpush.msra.mxu0 %v343
        %v345 = vand.u32 %v270, 4294901760
        %v346 = vsub.f32 %v270, %v345
        %v347 = vand.u32 %v346, 4294901760
        %v348 = vsub.f32 %v346, %v347
        %v349 = vand.u32 %v348, 4294901760
        %350 = vmatpush.msra.mxu0 %v349
        %v351 = vand.u32 %v266, 4294901760
        %v352 = vsub.f32 %v266, %v351
        %v353 = vand.u32 %v352, 4294901760
        %v354 = vsub.f32 %v352, %v353
        %v355 = vand.u32 %v354, 4294901760
        %356 = vmatpush.msra.mxu0 %v355
        %v357 = vand.u32 %v262, 4294901760
        %v358 = vsub.f32 %v262, %v357
        %v359 = vand.u32 %v358, 4294901760
        %v360 = vsub.f32 %v358, %v359
        %v361 = vand.u32 %v360, 4294901760
        %362 = vmatpush.msra.mxu0 %v361
        %v363 = vand.u32 %v258, 4294901760
        %v364 = vsub.f32 %v258, %v363
        %v365 = vand.u32 %v364, 4294901760
        %v366 = vsub.f32 %v364, %v365
        %v367 = vand.u32 %v366, 4294901760
        %368 = vmatpush.msra.mxu0 %v367
        %v369 = vand.u32 %v254, 4294901760
        %v370 = vsub.f32 %v254, %v369
        %v371 = vand.u32 %v370, 4294901760
        %v372 = vsub.f32 %v370, %v371
        %v373 = vand.u32 %v372, 4294901760
        %374 = vmatpush.msra.mxu0 %v373
        %v375 = vand.u32 %v250, 4294901760
        %v376 = vsub.f32 %v250, %v375
        %v377 = vand.u32 %v376, 4294901760
        %v378 = vsub.f32 %v376, %v377
        %v379 = vand.u32 %v378, 4294901760
        %380 = vmatpush.msra.mxu0 %v379
        %v381 = vand.u32 %v246, 4294901760
        %v382 = vsub.f32 %v246, %v381
        %v383 = vand.u32 %v382, 4294901760
        %v384 = vsub.f32 %v382, %v383
        %v385 = vand.u32 %v384, 4294901760
        %386 = vmatpush.msra.mxu0 %v385
        %v387 = vand.u32 %v242, 4294901760
        %v388 = vsub.f32 %v242, %v387
        %v389 = vand.u32 %v388, 4294901760
        %v390 = vsub.f32 %v388, %v389
        %v391 = vand.u32 %v390, 4294901760
        %392 = vmatpush.msra.mxu0 %v391
        %v393 = vand.u32 %v238, 4294901760
        %v394 = vsub.f32 %v238, %v393
        %v395 = vand.u32 %v394, 4294901760
        %v396 = vsub.f32 %v394, %v395
        %v397 = vand.u32 %v396, 4294901760
        %398 = vmatpush.msra.mxu0 %v397
        %v399 = vand.u32 %v234, 4294901760
        %v400 = vsub.f32 %v234, %v399
        %v401 = vand.u32 %v400, 4294901760
        %v402 = vsub.f32 %v400, %v401
        %v403 = vand.u32 %v402, 4294901760
        %404 = vmatpush.msra.mxu0 %v403
        %v405 = vand.u32 %v230, 4294901760
        %v406 = vsub.f32 %v230, %v405
        %v407 = vand.u32 %v406, 4294901760
        %v408 = vsub.f32 %v406, %v407
        %v409 = vand.u32 %v408, 4294901760
        %410 = vmatpush.msra.mxu0 %v409
        %v411 = vand.u32 %v226, 4294901760
        %v412 = vsub.f32 %v226, %v411
        %v413 = vand.u32 %v412, 4294901760
        %v414 = vsub.f32 %v412, %v413
        %v415 = vand.u32 %v414, 4294901760
        %416 = vmatpush.msra.mxu0 %v415
        %v417 = vand.u32 %v222, 4294901760
        %v418 = vsub.f32 %v222, %v417
        %v419 = vand.u32 %v418, 4294901760
        %v420 = vsub.f32 %v418, %v419
        %v421 = vand.u32 %v420, 4294901760
        %422 = vmatpush.msra.mxu0 %v421
        %v423 = vand.u32 %v221, 4294901760
        %424 = vmatmul.f32.gmra.mxu0 %v423
        %v425 = vpop.f32.mrf.mxu0
        %v426 = vadd.f32 %v325, %v425
        %427 = vdwg.mxu0
        %v428 = vand.u32 %v282, 4294901760
        %v429 = vsub.f32 %v282, %v428
        %430 = vmatpush.msra.mxu0 %v429
        %v431 = vand.u32 %v278, 4294901760
        %v432 = vsub.f32 %v278, %v431
        %433 = vmatpush.msra.mxu0 %v432
        %v434 = vand.u32 %v274, 4294901760
        %v435 = vsub.f32 %v274, %v434
        %436 = vmatpush.msra.mxu0 %v435
        %v437 = vand.u32 %v270, 4294901760
        %v438 = vsub.f32 %v270, %v437
        %439 = vmatpush.msra.mxu0 %v438
        %v440 = vand.u32 %v266, 4294901760
        %v441 = vsub.f32 %v266, %v440
        %442 = vmatpush.msra.mxu0 %v441
        %v443 = vand.u32 %v262, 4294901760
        %v444 = vsub.f32 %v262, %v443
        %445 = vmatpush.msra.mxu0 %v444
        %v446 = vand.u32 %v258, 4294901760
        %v447 = vsub.f32 %v258, %v446
        %448 = vmatpush.msra.mxu0 %v447
        %v449 = vand.u32 %v254, 4294901760
        %v450 = vsub.f32 %v254, %v449
        %451 = vmatpush.msra.mxu0 %v450
        %v452 = vand.u32 %v250, 4294901760
        %v453 = vsub.f32 %v250, %v452
        %454 = vmatpush.msra.mxu0 %v453
        %v455 = vand.u32 %v246, 4294901760
        %v456 = vsub.f32 %v246, %v455
        %457 = vmatpush.msra.mxu0 %v456
        %v458 = vand.u32 %v242, 4294901760
        %v459 = vsub.f32 %v242, %v458
        %460 = vmatpush.msra.mxu0 %v459
        %v461 = vand.u32 %v238, 4294901760
        %v462 = vsub.f32 %v238, %v461
        %463 = vmatpush.msra.mxu0 %v462
        %v464 = vand.u32 %v234, 4294901760
        %v465 = vsub.f32 %v234, %v464
        %466 = vmatpush.msra.mxu0 %v465
        %v467 = vand.u32 %v230, 4294901760
        %v468 = vsub.f32 %v230, %v467
        %469 = vmatpush.msra.mxu0 %v468
        %v470 = vand.u32 %v226, 4294901760
        %v471 = vsub.f32 %v226, %v470
        %472 = vmatpush.msra.mxu0 %v471
        %v473 = vand.u32 %v222, 4294901760
        %v474 = vsub.f32 %v222, %v473
        %475 = vmatpush.msra.mxu0 %v474
        %v476 = vand.u32 %v221, 4294901760
        %v477 = vsub.f32 %v221, %v476
        %478 = vmatmul.f32.gmra.mxu0 %v477
        %v479 = vpop.f32.mrf.mxu0
        %v480 = vadd.f32 %v426, %v479
        %481 = vdwg.mxu0
        %v482 = vand.u32 %v282, 4294901760
        %483 = vmatpush.msra.mxu0 %v482
        %v484 = vand.u32 %v278, 4294901760
        %485 = vmatpush.msra.mxu0 %v484
        %v486 = vand.u32 %v274, 4294901760
        %487 = vmatpush.msra.mxu0 %v486
        %v488 = vand.u32 %v270, 4294901760
        %489 = vmatpush.msra.mxu0 %v488
        %v490 = vand.u32 %v266, 4294901760
        %491 = vmatpush.msra.mxu0 %v490
        %v492 = vand.u32 %v262, 4294901760
        %493 = vmatpush.msra.mxu0 %v492
        %v494 = vand.u32 %v258, 4294901760
        %495 = vmatpush.msra.mxu0 %v494
        %v496 = vand.u32 %v254, 4294901760
        %497 = vmatpush.msra.mxu0 %v496
        %v498 = vand.u32 %v250, 4294901760
        %499 = vmatpush.msra.mxu0 %v498
        %v500 = vand.u32 %v246, 4294901760
        %501 = vmatpush.msra.mxu0 %v500
        %v502 = vand.u32 %v242, 4294901760
        %503 = vmatpush.msra.mxu0 %v502
        %v504 = vand.u32 %v238, 4294901760
        %505 = vmatpush.msra.mxu0 %v504
        %v506 = vand.u32 %v234, 4294901760
        %507 = vmatpush.msra.mxu0 %v506
        %v508 = vand.u32 %v230, 4294901760
        %509 = vmatpush.msra.mxu0 %v508
        %v510 = vand.u32 %v226, 4294901760
        %511 = vmatpush.msra.mxu0 %v510
        %v512 = vand.u32 %v222, 4294901760
        %513 = vmatpush.msra.mxu0 %v512
        %v514 = vand.u32 %v221, 4294901760
        %v515 = vsub.f32 %v221, %v514
        %v516 = vand.u32 %v515, 4294901760
        %517 = vmatmul.f32.gmra.mxu0 %v516
        %v518 = vpop.f32.mrf.mxu0
        %v519 = vadd.f32 %v480, %v518
        %520 = vdwg.mxu0
        %v521 = vand.u32 %v282, 4294901760
        %v522 = vsub.f32 %v282, %v521
        %v523 = vand.u32 %v522, 4294901760
        %524 = vmatpush.msra.mxu0 %v523
        %v525 = vand.u32 %v278, 4294901760
        %v526 = vsub.f32 %v278, %v525
        %v527 = vand.u32 %v526, 4294901760
        %528 = vmatpush.msra.mxu0 %v527
        %v529 = vand.u32 %v274, 4294901760
        %v530 = vsub.f32 %v274, %v529
        %v531 = vand.u32 %v530, 4294901760
        %532 = vmatpush.msra.mxu0 %v531
        %v533 = vand.u32 %v270, 4294901760
        %v534 = vsub.f32 %v270, %v533
        %v535 = vand.u32 %v534, 4294901760
        %536 = vmatpush.msra.mxu0 %v535
        %v537 = vand.u32 %v266, 4294901760
        %v538 = vsub.f32 %v266, %v537
        %v539 = vand.u32 %v538, 4294901760
        %540 = vmatpush.msra.mxu0 %v539
        %v541 = vand.u32 %v262, 4294901760
        %v542 = vsub.f32 %v262, %v541
        %v543 = vand.u32 %v542, 4294901760
        %544 = vmatpush.msra.mxu0 %v543
        %v545 = vand.u32 %v258, 4294901760
        %v546 = vsub.f32 %v258, %v545
        %v547 = vand.u32 %v546, 4294901760
        %548 = vmatpush.msra.mxu0 %v547
        %v549 = vand.u32 %v254, 4294901760
        %v550 = vsub.f32 %v254, %v549
        %v551 = vand.u32 %v550, 4294901760
        %552 = vmatpush.msra.mxu0 %v551
        %v553 = vand.u32 %v250, 4294901760
        %v554 = vsub.f32 %v250, %v553
        %v555 = vand.u32 %v554, 4294901760
        %556 = vmatpush.msra.mxu0 %v555
        %v557 = vand.u32 %v246, 4294901760
        %v558 = vsub.f32 %v246, %v557
        %v559 = vand.u32 %v558, 4294901760
        %560 = vmatpush.msra.mxu0 %v559
        %v561 = vand.u32 %v242, 4294901760
        %v562 = vsub.f32 %v242, %v561
        %v563 = vand.u32 %v562, 4294901760
        %564 = vmatpush.msra.mxu0 %v563
        %v565 = vand.u32 %v238, 4294901760
        %v566 = vsub.f32 %v238, %v565
        %v567 = vand.u32 %v566, 4294901760
        %568 = vmatpush.msra.mxu0 %v567
        %v569 = vand.u32 %v234, 4294901760
        %v570 = vsub.f32 %v234, %v569
        %v571 = vand.u32 %v570, 4294901760
        %572 = vmatpush.msra.mxu0 %v571
        %v573 = vand.u32 %v230, 4294901760
        %v574 = vsub.f32 %v230, %v573
        %v575 = vand.u32 %v574, 4294901760
        %576 = vmatpush.msra.mxu0 %v575
        %v577 = vand.u32 %v226, 4294901760
        %v578 = vsub.f32 %v226, %v577
        %v579 = vand.u32 %v578, 4294901760
        %580 = vmatpush.msra.mxu0 %v579
        %v581 = vand.u32 %v222, 4294901760
        %v582 = vsub.f32 %v222, %v581
        %v583 = vand.u32 %v582, 4294901760
        %584 = vmatpush.msra.mxu0 %v583
        %v585 = vand.u32 %v221, 4294901760
        %586 = vmatmul.f32.gmra.mxu0 %v585
        %v587 = vpop.f32.mrf.mxu0
        %v588 = vadd.f32 %v519, %v587
        %589 = vdwg.mxu0
        %v590 = vand.u32 %v282, 4294901760
        %591 = vmatpush.msra.mxu0 %v590
        %v592 = vand.u32 %v278, 4294901760
        %593 = vmatpush.msra.mxu0 %v592
        %v594 = vand.u32 %v274, 4294901760
        %595 = vmatpush.msra.mxu0 %v594
        %v596 = vand.u32 %v270, 4294901760
        %597 = vmatpush.msra.mxu0 %v596
        %v598 = vand.u32 %v266, 4294901760
        %599 = vmatpush.msra.mxu0 %v598
        %v600 = vand.u32 %v262, 4294901760
        %601 = vmatpush.msra.mxu0 %v600
        %v602 = vand.u32 %v258, 4294901760
        %603 = vmatpush.msra.mxu0 %v602
        %v604 = vand.u32 %v254, 4294901760
        %605 = vmatpush.msra.mxu0 %v604
        %v606 = vand.u32 %v250, 4294901760
        %607 = vmatpush.msra.mxu0 %v606
        %v608 = vand.u32 %v246, 4294901760
        %609 = vmatpush.msra.mxu0 %v608
        %v610 = vand.u32 %v242, 4294901760
        %611 = vmatpush.msra.mxu0 %v610
        %v612 = vand.u32 %v238, 4294901760
        %613 = vmatpush.msra.mxu0 %v612
        %v614 = vand.u32 %v234, 4294901760
        %615 = vmatpush.msra.mxu0 %v614
        %v616 = vand.u32 %v230, 4294901760
        %617 = vmatpush.msra.mxu0 %v616
        %v618 = vand.u32 %v226, 4294901760
        %619 = vmatpush.msra.mxu0 %v618
        %v620 = vand.u32 %v222, 4294901760
        %621 = vmatpush.msra.mxu0 %v620
        %v622 = vand.u32 %v221, 4294901760
        %623 = vmatmul.f32.gmra.mxu0 %v622
        %v624 = vpop.f32.mrf.mxu0
        %v625 = vadd.f32 %v588, %v624
        %626 = vdwg.mxu0
        %v627 = vand.u32 %v283, 4294901760
        %628 = vmatpush.msra.mxu0 %v627
        %v629 = vand.u32 %v279, 4294901760
        %630 = vmatpush.msra.mxu0 %v629
        %v631 = vand.u32 %v275, 4294901760
        %632 = vmatpush.msra.mxu0 %v631
        %v633 = vand.u32 %v271, 4294901760
        %634 = vmatpush.msra.mxu0 %v633
        %v635 = vand.u32 %v267, 4294901760
        %636 = vmatpush.msra.mxu0 %v635
        %v637 = vand.u32 %v263, 4294901760
        %638 = vmatpush.msra.mxu0 %v637
        %v639 = vand.u32 %v259, 4294901760
        %640 = vmatpush.msra.mxu0 %v639
        %v641 = vand.u32 %v255, 4294901760
        %642 = vmatpush.msra.mxu0 %v641
        %v643 = vand.u32 %v251, 4294901760
        %644 = vmatpush.msra.mxu0 %v643
        %v645 = vand.u32 %v247, 4294901760
        %646 = vmatpush.msra.mxu0 %v645
        %v647 = vand.u32 %v243, 4294901760
        %648 = vmatpush.msra.mxu0 %v647
        %v649 = vand.u32 %v239, 4294901760
        %650 = vmatpush.msra.mxu0 %v649
        %v651 = vand.u32 %v235, 4294901760
        %652 = vmatpush.msra.mxu0 %v651
        %v653 = vand.u32 %v231, 4294901760
        %654 = vmatpush.msra.mxu0 %v653
        %v655 = vand.u32 %v227, 4294901760
        %656 = vmatpush.msra.mxu0 %v655
        %v657 = vand.u32 %v223, 4294901760
        %658 = vmatpush.msra.mxu0 %v657
        %v659 = vand.u32 %v221, 4294901760
        %v660 = vsub.f32 %v221, %v659
        %v661 = vand.u32 %v660, 4294901760
        %v662 = vsub.f32 %v660, %v661
        %v663 = vand.u32 %v662, 4294901760
        %664 = vmatmul.f32.gmra.mxu0 %v663
        %v665 = vpop.f32.mrf.mxu0
        %v666 = vadd.f32 0.0, %v665
        %667 = vdwg.mxu0
        %v668 = vand.u32 %v283, 4294901760
        %v669 = vsub.f32 %v283, %v668
        %v670 = vand.u32 %v669, 4294901760
        %v671 = vsub.f32 %v669, %v670
        %v672 = vand.u32 %v671, 4294901760
        %673 = vmatpush.msra.mxu0 %v672
        %v674 = vand.u32 %v279, 4294901760
        %v675 = vsub.f32 %v279, %v674
        %v676 = vand.u32 %v675, 4294901760
        %v677 = vsub.f32 %v675, %v676
        %v678 = vand.u32 %v677, 4294901760
        %679 = vmatpush.msra.mxu0 %v678
        %v680 = vand.u32 %v275, 4294901760
        %v681 = vsub.f32 %v275, %v680
        %v682 = vand.u32 %v681, 4294901760
        %v683 = vsub.f32 %v681, %v682
        %v684 = vand.u32 %v683, 4294901760
        %685 = vmatpush.msra.mxu0 %v684
        %v686 = vand.u32 %v271, 4294901760
        %v687 = vsub.f32 %v271, %v686
        %v688 = vand.u32 %v687, 4294901760
        %v689 = vsub.f32 %v687, %v688
        %v690 = vand.u32 %v689, 4294901760
        %691 = vmatpush.msra.mxu0 %v690
        %v692 = vand.u32 %v267, 4294901760
        %v693 = vsub.f32 %v267, %v692
        %v694 = vand.u32 %v693, 4294901760
        %v695 = vsub.f32 %v693, %v694
        %v696 = vand.u32 %v695, 4294901760
        %697 = vmatpush.msra.mxu0 %v696
        %v698 = vand.u32 %v263, 4294901760
        %v699 = vsub.f32 %v263, %v698
        %v700 = vand.u32 %v699, 4294901760
        %v701 = vsub.f32 %v699, %v700
        %v702 = vand.u32 %v701, 4294901760
        %703 = vmatpush.msra.mxu0 %v702
        %v704 = vand.u32 %v259, 4294901760
        %v705 = vsub.f32 %v259, %v704
        %v706 = vand.u32 %v705, 4294901760
        %v707 = vsub.f32 %v705, %v706
        %v708 = vand.u32 %v707, 4294901760
        %709 = vmatpush.msra.mxu0 %v708
        %v710 = vand.u32 %v255, 4294901760
        %v711 = vsub.f32 %v255, %v710
        %v712 = vand.u32 %v711, 4294901760
        %v713 = vsub.f32 %v711, %v712
        %v714 = vand.u32 %v713, 4294901760
        %715 = vmatpush.msra.mxu0 %v714
        %v716 = vand.u32 %v251, 4294901760
        %v717 = vsub.f32 %v251, %v716
        %v718 = vand.u32 %v717, 4294901760
        %v719 = vsub.f32 %v717, %v718
        %v720 = vand.u32 %v719, 4294901760
        %721 = vmatpush.msra.mxu0 %v720
        %v722 = vand.u32 %v247, 4294901760
        %v723 = vsub.f32 %v247, %v722
        %v724 = vand.u32 %v723, 4294901760
        %v725 = vsub.f32 %v723, %v724
        %v726 = vand.u32 %v725, 4294901760
        %727 = vmatpush.msra.mxu0 %v726
        %v728 = vand.u32 %v243, 4294901760
        %v729 = vsub.f32 %v243, %v728
        %v730 = vand.u32 %v729, 4294901760
        %v731 = vsub.f32 %v729, %v730
        %v732 = vand.u32 %v731, 4294901760
        %733 = vmatpush.msra.mxu0 %v732
        %v734 = vand.u32 %v239, 4294901760
        %v735 = vsub.f32 %v239, %v734
        %v736 = vand.u32 %v735, 4294901760
        %v737 = vsub.f32 %v735, %v736
        %v738 = vand.u32 %v737, 4294901760
        %739 = vmatpush.msra.mxu0 %v738
        %v740 = vand.u32 %v235, 4294901760
        %v741 = vsub.f32 %v235, %v740
        %v742 = vand.u32 %v741, 4294901760
        %v743 = vsub.f32 %v741, %v742
        %v744 = vand.u32 %v743, 4294901760
        %745 = vmatpush.msra.mxu0 %v744
        %v746 = vand.u32 %v231, 4294901760
        %v747 = vsub.f32 %v231, %v746
        %v748 = vand.u32 %v747, 4294901760
        %v749 = vsub.f32 %v747, %v748
        %v750 = vand.u32 %v749, 4294901760
        %751 = vmatpush.msra.mxu0 %v750
        %v752 = vand.u32 %v227, 4294901760
        %v753 = vsub.f32 %v227, %v752
        %v754 = vand.u32 %v753, 4294901760
        %v755 = vsub.f32 %v753, %v754
        %v756 = vand.u32 %v755, 4294901760
        %757 = vmatpush.msra.mxu0 %v756
        %v758 = vand.u32 %v223, 4294901760
        %v759 = vsub.f32 %v223, %v758
        %v760 = vand.u32 %v759, 4294901760
        %v761 = vsub.f32 %v759, %v760
        %v762 = vand.u32 %v761, 4294901760
        %763 = vmatpush.msra.mxu0 %v762
        %v764 = vand.u32 %v221, 4294901760
        %765 = vmatmul.f32.gmra.mxu0 %v764
        %v766 = vpop.f32.mrf.mxu0
        %v767 = vadd.f32 %v666, %v766
        %768 = vdwg.mxu0
        %v769 = vand.u32 %v283, 4294901760
        %v770 = vsub.f32 %v283, %v769
        %771 = vmatpush.msra.mxu0 %v770
        %v772 = vand.u32 %v279, 4294901760
        %v773 = vsub.f32 %v279, %v772
        %774 = vmatpush.msra.mxu0 %v773
        %v775 = vand.u32 %v275, 4294901760
        %v776 = vsub.f32 %v275, %v775
        %777 = vmatpush.msra.mxu0 %v776
        %v778 = vand.u32 %v271, 4294901760
        %v779 = vsub.f32 %v271, %v778
        %780 = vmatpush.msra.mxu0 %v779
        %v781 = vand.u32 %v267, 4294901760
        %v782 = vsub.f32 %v267, %v781
        %783 = vmatpush.msra.mxu0 %v782
        %v784 = vand.u32 %v263, 4294901760
        %v785 = vsub.f32 %v263, %v784
        %786 = vmatpush.msra.mxu0 %v785
        %v787 = vand.u32 %v259, 4294901760
        %v788 = vsub.f32 %v259, %v787
        %789 = vmatpush.msra.mxu0 %v788
        %v790 = vand.u32 %v255, 4294901760
        %v791 = vsub.f32 %v255, %v790
        %792 = vmatpush.msra.mxu0 %v791
        %v793 = vand.u32 %v251, 4294901760
        %v794 = vsub.f32 %v251, %v793
        %795 = vmatpush.msra.mxu0 %v794
        %v796 = vand.u32 %v247, 4294901760
        %v797 = vsub.f32 %v247, %v796
        %798 = vmatpush.msra.mxu0 %v797
        %v799 = vand.u32 %v243, 4294901760
        %v800 = vsub.f32 %v243, %v799
        %801 = vmatpush.msra.mxu0 %v800
        %v802 = vand.u32 %v239, 4294901760
        %v803 = vsub.f32 %v239, %v802
        %804 = vmatpush.msra.mxu0 %v803
        %v805 = vand.u32 %v235, 4294901760
        %v806 = vsub.f32 %v235, %v805
        %807 = vmatpush.msra.mxu0 %v806
        %v808 = vand.u32 %v231, 4294901760
        %v809 = vsub.f32 %v231, %v808
        %810 = vmatpush.msra.mxu0 %v809
        %v811 = vand.u32 %v227, 4294901760
        %v812 = vsub.f32 %v227, %v811
        %813 = vmatpush.msra.mxu0 %v812
        %v814 = vand.u32 %v223, 4294901760
        %v815 = vsub.f32 %v223, %v814
        %816 = vmatpush.msra.mxu0 %v815
        %v817 = vand.u32 %v221, 4294901760
        %v818 = vsub.f32 %v221, %v817
        %819 = vmatmul.f32.gmra.mxu0 %v818
        %v820 = vpop.f32.mrf.mxu0
        %v821 = vadd.f32 %v767, %v820
        %822 = vdwg.mxu0
        %v823 = vand.u32 %v283, 4294901760
        %824 = vmatpush.msra.mxu0 %v823
        %v825 = vand.u32 %v279, 4294901760
        %826 = vmatpush.msra.mxu0 %v825
        %v827 = vand.u32 %v275, 4294901760
        %828 = vmatpush.msra.mxu0 %v827
        %v829 = vand.u32 %v271, 4294901760
        %830 = vmatpush.msra.mxu0 %v829
        %v831 = vand.u32 %v267, 4294901760
        %832 = vmatpush.msra.mxu0 %v831
        %v833 = vand.u32 %v263, 4294901760
        %834 = vmatpush.msra.mxu0 %v833
        %v835 = vand.u32 %v259, 4294901760
        %836 = vmatpush.msra.mxu0 %v835
        %v837 = vand.u32 %v255, 4294901760
        %838 = vmatpush.msra.mxu0 %v837
        %v839 = vand.u32 %v251, 4294901760
        %840 = vmatpush.msra.mxu0 %v839
        %v841 = vand.u32 %v247, 4294901760
        %842 = vmatpush.msra.mxu0 %v841
        %v843 = vand.u32 %v243, 4294901760
        %844 = vmatpush.msra.mxu0 %v843
        %v845 = vand.u32 %v239, 4294901760
        %846 = vmatpush.msra.mxu0 %v845
        %v847 = vand.u32 %v235, 4294901760
        %848 = vmatpush.msra.mxu0 %v847
        %v849 = vand.u32 %v231, 4294901760
        %850 = vmatpush.msra.mxu0 %v849
        %v851 = vand.u32 %v227, 4294901760
        %852 = vmatpush.msra.mxu0 %v851
        %v853 = vand.u32 %v223, 4294901760
        %854 = vmatpush.msra.mxu0 %v853
        %v855 = vand.u32 %v221, 4294901760
        %v856 = vsub.f32 %v221, %v855
        %v857 = vand.u32 %v856, 4294901760
        %858 = vmatmul.f32.gmra.mxu0 %v857
        %v859 = vpop.f32.mrf.mxu0
        %v860 = vadd.f32 %v821, %v859
        %861 = vdwg.mxu0
        %v862 = vand.u32 %v283, 4294901760
        %v863 = vsub.f32 %v283, %v862
        %v864 = vand.u32 %v863, 4294901760
        %865 = vmatpush.msra.mxu0 %v864
        %v866 = vand.u32 %v279, 4294901760
        %v867 = vsub.f32 %v279, %v866
        %v868 = vand.u32 %v867, 4294901760
        %869 = vmatpush.msra.mxu0 %v868
        %v870 = vand.u32 %v275, 4294901760
        %v871 = vsub.f32 %v275, %v870
        %v872 = vand.u32 %v871, 4294901760
        %873 = vmatpush.msra.mxu0 %v872
        %v874 = vand.u32 %v271, 4294901760
        %v875 = vsub.f32 %v271, %v874
        %v876 = vand.u32 %v875, 4294901760
        %877 = vmatpush.msra.mxu0 %v876
        %v878 = vand.u32 %v267, 4294901760
        %v879 = vsub.f32 %v267, %v878
        %v880 = vand.u32 %v879, 4294901760
        %881 = vmatpush.msra.mxu0 %v880
        %v882 = vand.u32 %v263, 4294901760
        %v883 = vsub.f32 %v263, %v882
        %v884 = vand.u32 %v883, 4294901760
        %885 = vmatpush.msra.mxu0 %v884
        %v886 = vand.u32 %v259, 4294901760
        %v887 = vsub.f32 %v259, %v886
        %v888 = vand.u32 %v887, 4294901760
        %889 = vmatpush.msra.mxu0 %v888
        %v890 = vand.u32 %v255, 4294901760
        %v891 = vsub.f32 %v255, %v890
        %v892 = vand.u32 %v891, 4294901760
        %893 = vmatpush.msra.mxu0 %v892
        %v894 = vand.u32 %v251, 4294901760
        %v895 = vsub.f32 %v251, %v894
        %v896 = vand.u32 %v895, 4294901760
        %897 = vmatpush.msra.mxu0 %v896
        %v898 = vand.u32 %v247, 4294901760
        %v899 = vsub.f32 %v247, %v898
        %v900 = vand.u32 %v899, 4294901760
        %901 = vmatpush.msra.mxu0 %v900
        %v902 = vand.u32 %v243, 4294901760
        %v903 = vsub.f32 %v243, %v902
        %v904 = vand.u32 %v903, 4294901760
        %905 = vmatpush.msra.mxu0 %v904
        %v906 = vand.u32 %v239, 4294901760
        %v907 = vsub.f32 %v239, %v906
        %v908 = vand.u32 %v907, 4294901760
        %909 = vmatpush.msra.mxu0 %v908
        %v910 = vand.u32 %v235, 4294901760
        %v911 = vsub.f32 %v235, %v910
        %v912 = vand.u32 %v911, 4294901760
        %913 = vmatpush.msra.mxu0 %v912
        %v914 = vand.u32 %v231, 4294901760
        %v915 = vsub.f32 %v231, %v914
        %v916 = vand.u32 %v915, 4294901760
        %917 = vmatpush.msra.mxu0 %v916
        %v918 = vand.u32 %v227, 4294901760
        %v919 = vsub.f32 %v227, %v918
        %v920 = vand.u32 %v919, 4294901760
        %921 = vmatpush.msra.mxu0 %v920
        %v922 = vand.u32 %v223, 4294901760
        %v923 = vsub.f32 %v223, %v922
        %v924 = vand.u32 %v923, 4294901760
        %925 = vmatpush.msra.mxu0 %v924
        %v926 = vand.u32 %v221, 4294901760
        %927 = vmatmul.f32.gmra.mxu0 %v926
        %v928 = vpop.f32.mrf.mxu0
        %v929 = vadd.f32 %v860, %v928
        %930 = vdwg.mxu0
        %v931 = vand.u32 %v283, 4294901760
        %932 = vmatpush.msra.mxu0 %v931
        %v933 = vand.u32 %v279, 4294901760
        %934 = vmatpush.msra.mxu0 %v933
        %v935 = vand.u32 %v275, 4294901760
        %936 = vmatpush.msra.mxu0 %v935
        %v937 = vand.u32 %v271, 4294901760
        %938 = vmatpush.msra.mxu0 %v937
        %v939 = vand.u32 %v267, 4294901760
        %940 = vmatpush.msra.mxu0 %v939
        %v941 = vand.u32 %v263, 4294901760
        %942 = vmatpush.msra.mxu0 %v941
        %v943 = vand.u32 %v259, 4294901760
        %944 = vmatpush.msra.mxu0 %v943
        %v945 = vand.u32 %v255, 4294901760
        %946 = vmatpush.msra.mxu0 %v945
        %v947 = vand.u32 %v251, 4294901760
        %948 = vmatpush.msra.mxu0 %v947
        %v949 = vand.u32 %v247, 4294901760
        %950 = vmatpush.msra.mxu0 %v949
        %v951 = vand.u32 %v243, 4294901760
        %952 = vmatpush.msra.mxu0 %v951
        %v953 = vand.u32 %v239, 4294901760
        %954 = vmatpush.msra.mxu0 %v953
        %v955 = vand.u32 %v235, 4294901760
        %956 = vmatpush.msra.mxu0 %v955
        %v957 = vand.u32 %v231, 4294901760
        %958 = vmatpush.msra.mxu0 %v957
        %v959 = vand.u32 %v227, 4294901760
        %960 = vmatpush.msra.mxu0 %v959
        %v961 = vand.u32 %v223, 4294901760
        %962 = vmatpush.msra.mxu0 %v961
        %v963 = vand.u32 %v221, 4294901760
        %964 = vmatmul.f32.gmra.mxu0 %v963
        %v965 = vpop.f32.mrf.mxu0
        %v966 = vadd.f32 %v929, %v965
        %967 = vdwg.mxu0
        %v968 = vand.u32 %v284, 4294901760
        %969 = vmatpush.msra.mxu0 %v968
        %v970 = vand.u32 %v280, 4294901760
        %971 = vmatpush.msra.mxu0 %v970
        %v972 = vand.u32 %v276, 4294901760
        %973 = vmatpush.msra.mxu0 %v972
        %v974 = vand.u32 %v272, 4294901760
        %975 = vmatpush.msra.mxu0 %v974
        %v976 = vand.u32 %v268, 4294901760
        %977 = vmatpush.msra.mxu0 %v976
        %v978 = vand.u32 %v264, 4294901760
        %979 = vmatpush.msra.mxu0 %v978
        %v980 = vand.u32 %v260, 4294901760
        %981 = vmatpush.msra.mxu0 %v980
        %v982 = vand.u32 %v256, 4294901760
        %983 = vmatpush.msra.mxu0 %v982
        %v984 = vand.u32 %v252, 4294901760
        %985 = vmatpush.msra.mxu0 %v984
        %v986 = vand.u32 %v248, 4294901760
        %987 = vmatpush.msra.mxu0 %v986
        %v988 = vand.u32 %v244, 4294901760
        %989 = vmatpush.msra.mxu0 %v988
        %v990 = vand.u32 %v240, 4294901760
        %991 = vmatpush.msra.mxu0 %v990
        %v992 = vand.u32 %v236, 4294901760
        %993 = vmatpush.msra.mxu0 %v992
        %v994 = vand.u32 %v232, 4294901760
        %995 = vmatpush.msra.mxu0 %v994
        %v996 = vand.u32 %v228, 4294901760
        %997 = vmatpush.msra.mxu0 %v996
        %v998 = vand.u32 %v224, 4294901760
        %999 = vmatpush.msra.mxu0 %v998
        %v1000 = vand.u32 %v221, 4294901760
        %v1001 = vsub.f32 %v221, %v1000
        %v1002 = vand.u32 %v1001, 4294901760
        %v1003 = vsub.f32 %v1001, %v1002
        %v1004 = vand.u32 %v1003, 4294901760
        %1005 = vmatmul.f32.gmra.mxu0 %v1004
        %v1006 = vpop.f32.mrf.mxu0
        %v1007 = vadd.f32 0.0, %v1006
        %1008 = vdwg.mxu0
        %v1009 = vand.u32 %v284, 4294901760
        %v1010 = vsub.f32 %v284, %v1009
        %v1011 = vand.u32 %v1010, 4294901760
        %v1012 = vsub.f32 %v1010, %v1011
        %v1013 = vand.u32 %v1012, 4294901760
        %1014 = vmatpush.msra.mxu0 %v1013
        %v1015 = vand.u32 %v280, 4294901760
        %v1016 = vsub.f32 %v280, %v1015
        %v1017 = vand.u32 %v1016, 4294901760
        %v1018 = vsub.f32 %v1016, %v1017
        %v1019 = vand.u32 %v1018, 4294901760
        %1020 = vmatpush.msra.mxu0 %v1019
        %v1021 = vand.u32 %v276, 4294901760
        %v1022 = vsub.f32 %v276, %v1021
        %v1023 = vand.u32 %v1022, 4294901760
        %v1024 = vsub.f32 %v1022, %v1023
        %v1025 = vand.u32 %v1024, 4294901760
        %1026 = vmatpush.msra.mxu0 %v1025
        %v1027 = vand.u32 %v272, 4294901760
        %v1028 = vsub.f32 %v272, %v1027
        %v1029 = vand.u32 %v1028, 4294901760
        %v1030 = vsub.f32 %v1028, %v1029
        %v1031 = vand.u32 %v1030, 4294901760
        %1032 = vmatpush.msra.mxu0 %v1031
        %v1033 = vand.u32 %v268, 4294901760
        %v1034 = vsub.f32 %v268, %v1033
        %v1035 = vand.u32 %v1034, 4294901760
        %v1036 = vsub.f32 %v1034, %v1035
        %v1037 = vand.u32 %v1036, 4294901760
        %1038 = vmatpush.msra.mxu0 %v1037
        %v1039 = vand.u32 %v264, 4294901760
        %v1040 = vsub.f32 %v264, %v1039
        %v1041 = vand.u32 %v1040, 4294901760
        %v1042 = vsub.f32 %v1040, %v1041
        %v1043 = vand.u32 %v1042, 4294901760
        %1044 = vmatpush.msra.mxu0 %v1043
        %v1045 = vand.u32 %v260, 4294901760
        %v1046 = vsub.f32 %v260, %v1045
        %v1047 = vand.u32 %v1046, 4294901760
        %v1048 = vsub.f32 %v1046, %v1047
        %v1049 = vand.u32 %v1048, 4294901760
        %1050 = vmatpush.msra.mxu0 %v1049
        %v1051 = vand.u32 %v256, 4294901760
        %v1052 = vsub.f32 %v256, %v1051
        %v1053 = vand.u32 %v1052, 4294901760
        %v1054 = vsub.f32 %v1052, %v1053
        %v1055 = vand.u32 %v1054, 4294901760
        %1056 = vmatpush.msra.mxu0 %v1055
        %v1057 = vand.u32 %v252, 4294901760
        %v1058 = vsub.f32 %v252, %v1057
        %v1059 = vand.u32 %v1058, 4294901760
        %v1060 = vsub.f32 %v1058, %v1059
        %v1061 = vand.u32 %v1060, 4294901760
        %1062 = vmatpush.msra.mxu0 %v1061
        %v1063 = vand.u32 %v248, 4294901760
        %v1064 = vsub.f32 %v248, %v1063
        %v1065 = vand.u32 %v1064, 4294901760
        %v1066 = vsub.f32 %v1064, %v1065
        %v1067 = vand.u32 %v1066, 4294901760
        %1068 = vmatpush.msra.mxu0 %v1067
        %v1069 = vand.u32 %v244, 4294901760
        %v1070 = vsub.f32 %v244, %v1069
        %v1071 = vand.u32 %v1070, 4294901760
        %v1072 = vsub.f32 %v1070, %v1071
        %v1073 = vand.u32 %v1072, 4294901760
        %1074 = vmatpush.msra.mxu0 %v1073
        %v1075 = vand.u32 %v240, 4294901760
        %v1076 = vsub.f32 %v240, %v1075
        %v1077 = vand.u32 %v1076, 4294901760
        %v1078 = vsub.f32 %v1076, %v1077
        %v1079 = vand.u32 %v1078, 4294901760
        %1080 = vmatpush.msra.mxu0 %v1079
        %v1081 = vand.u32 %v236, 4294901760
        %v1082 = vsub.f32 %v236, %v1081
        %v1083 = vand.u32 %v1082, 4294901760
        %v1084 = vsub.f32 %v1082, %v1083
        %v1085 = vand.u32 %v1084, 4294901760
        %1086 = vmatpush.msra.mxu0 %v1085
        %v1087 = vand.u32 %v232, 4294901760
        %v1088 = vsub.f32 %v232, %v1087
        %v1089 = vand.u32 %v1088, 4294901760
        %v1090 = vsub.f32 %v1088, %v1089
        %v1091 = vand.u32 %v1090, 4294901760
        %1092 = vmatpush.msra.mxu0 %v1091
        %v1093 = vand.u32 %v228, 4294901760
        %v1094 = vsub.f32 %v228, %v1093
        %v1095 = vand.u32 %v1094, 4294901760
        %v1096 = vsub.f32 %v1094, %v1095
        %v1097 = vand.u32 %v1096, 4294901760
        %1098 = vmatpush.msra.mxu0 %v1097
        %v1099 = vand.u32 %v224, 4294901760
        %v1100 = vsub.f32 %v224, %v1099
        %v1101 = vand.u32 %v1100, 4294901760
        %v1102 = vsub.f32 %v1100, %v1101
        %v1103 = vand.u32 %v1102, 4294901760
        %1104 = vmatpush.msra.mxu0 %v1103
        %v1105 = vand.u32 %v221, 4294901760
        %1106 = vmatmul.f32.gmra.mxu0 %v1105
        %v1107 = vpop.f32.mrf.mxu0
        %v1108 = vadd.f32 %v1007, %v1107
        %1109 = vdwg.mxu0
        %v1110 = vand.u32 %v284, 4294901760
        %v1111 = vsub.f32 %v284, %v1110
        %1112 = vmatpush.msra.mxu0 %v1111
        %v1113 = vand.u32 %v280, 4294901760
        %v1114 = vsub.f32 %v280, %v1113
        %1115 = vmatpush.msra.mxu0 %v1114
        %v1116 = vand.u32 %v276, 4294901760
        %v1117 = vsub.f32 %v276, %v1116
        %1118 = vmatpush.msra.mxu0 %v1117
        %v1119 = vand.u32 %v272, 4294901760
        %v1120 = vsub.f32 %v272, %v1119
        %1121 = vmatpush.msra.mxu0 %v1120
        %v1122 = vand.u32 %v268, 4294901760
        %v1123 = vsub.f32 %v268, %v1122
        %1124 = vmatpush.msra.mxu0 %v1123
        %v1125 = vand.u32 %v264, 4294901760
        %v1126 = vsub.f32 %v264, %v1125
        %1127 = vmatpush.msra.mxu0 %v1126
        %v1128 = vand.u32 %v260, 4294901760
        %v1129 = vsub.f32 %v260, %v1128
        %1130 = vmatpush.msra.mxu0 %v1129
        %v1131 = vand.u32 %v256, 4294901760
        %v1132 = vsub.f32 %v256, %v1131
        %1133 = vmatpush.msra.mxu0 %v1132
        %v1134 = vand.u32 %v252, 4294901760
        %v1135 = vsub.f32 %v252, %v1134
        %1136 = vmatpush.msra.mxu0 %v1135
        %v1137 = vand.u32 %v248, 4294901760
        %v1138 = vsub.f32 %v248, %v1137
        %1139 = vmatpush.msra.mxu0 %v1138
        %v1140 = vand.u32 %v244, 4294901760
        %v1141 = vsub.f32 %v244, %v1140
        %1142 = vmatpush.msra.mxu0 %v1141
        %v1143 = vand.u32 %v240, 4294901760
        %v1144 = vsub.f32 %v240, %v1143
        %1145 = vmatpush.msra.mxu0 %v1144
        %v1146 = vand.u32 %v236, 4294901760
        %v1147 = vsub.f32 %v236, %v1146
        %1148 = vmatpush.msra.mxu0 %v1147
        %v1149 = vand.u32 %v232, 4294901760
        %v1150 = vsub.f32 %v232, %v1149
        %1151 = vmatpush.msra.mxu0 %v1150
        %v1152 = vand.u32 %v228, 4294901760
        %v1153 = vsub.f32 %v228, %v1152
        %1154 = vmatpush.msra.mxu0 %v1153
        %v1155 = vand.u32 %v224, 4294901760
        %v1156 = vsub.f32 %v224, %v1155
        %1157 = vmatpush.msra.mxu0 %v1156
        %v1158 = vand.u32 %v221, 4294901760
        %v1159 = vsub.f32 %v221, %v1158
        %1160 = vmatmul.f32.gmra.mxu0 %v1159
        %v1161 = vpop.f32.mrf.mxu0
        %v1162 = vadd.f32 %v1108, %v1161
        %1163 = vdwg.mxu0
        %v1164 = vand.u32 %v284, 4294901760
        %1165 = vmatpush.msra.mxu0 %v1164
        %v1166 = vand.u32 %v280, 4294901760
        %1167 = vmatpush.msra.mxu0 %v1166
        %v1168 = vand.u32 %v276, 4294901760
        %1169 = vmatpush.msra.mxu0 %v1168
        %v1170 = vand.u32 %v272, 4294901760
        %1171 = vmatpush.msra.mxu0 %v1170
        %v1172 = vand.u32 %v268, 4294901760
        %1173 = vmatpush.msra.mxu0 %v1172
        %v1174 = vand.u32 %v264, 4294901760
        %1175 = vmatpush.msra.mxu0 %v1174
        %v1176 = vand.u32 %v260, 4294901760
        %1177 = vmatpush.msra.mxu0 %v1176
        %v1178 = vand.u32 %v256, 4294901760
        %1179 = vmatpush.msra.mxu0 %v1178
        %v1180 = vand.u32 %v252, 4294901760
        %1181 = vmatpush.msra.mxu0 %v1180
        %v1182 = vand.u32 %v248, 4294901760
        %1183 = vmatpush.msra.mxu0 %v1182
        %v1184 = vand.u32 %v244, 4294901760
        %1185 = vmatpush.msra.mxu0 %v1184
        %v1186 = vand.u32 %v240, 4294901760
        %1187 = vmatpush.msra.mxu0 %v1186
        %v1188 = vand.u32 %v236, 4294901760
        %1189 = vmatpush.msra.mxu0 %v1188
        %v1190 = vand.u32 %v232, 4294901760
        %1191 = vmatpush.msra.mxu0 %v1190
        %v1192 = vand.u32 %v228, 4294901760
        %1193 = vmatpush.msra.mxu0 %v1192
        %v1194 = vand.u32 %v224, 4294901760
        %1195 = vmatpush.msra.mxu0 %v1194
        %v1196 = vand.u32 %v221, 4294901760
        %v1197 = vsub.f32 %v221, %v1196
        %v1198 = vand.u32 %v1197, 4294901760
        %1199 = vmatmul.f32.gmra.mxu0 %v1198
        %v1200 = vpop.f32.mrf.mxu0
        %v1201 = vadd.f32 %v1162, %v1200
        %1202 = vdwg.mxu0
        %v1203 = vand.u32 %v284, 4294901760
        %v1204 = vsub.f32 %v284, %v1203
        %v1205 = vand.u32 %v1204, 4294901760
        %1206 = vmatpush.msra.mxu0 %v1205
        %v1207 = vand.u32 %v280, 4294901760
        %v1208 = vsub.f32 %v280, %v1207
        %v1209 = vand.u32 %v1208, 4294901760
        %1210 = vmatpush.msra.mxu0 %v1209
        %v1211 = vand.u32 %v276, 4294901760
        %v1212 = vsub.f32 %v276, %v1211
        %v1213 = vand.u32 %v1212, 4294901760
        %1214 = vmatpush.msra.mxu0 %v1213
        %v1215 = vand.u32 %v272, 4294901760
        %v1216 = vsub.f32 %v272, %v1215
        %v1217 = vand.u32 %v1216, 4294901760
        %1218 = vmatpush.msra.mxu0 %v1217
        %v1219 = vand.u32 %v268, 4294901760
        %v1220 = vsub.f32 %v268, %v1219
        %v1221 = vand.u32 %v1220, 4294901760
        %1222 = vmatpush.msra.mxu0 %v1221
        %v1223 = vand.u32 %v264, 4294901760
        %v1224 = vsub.f32 %v264, %v1223
        %v1225 = vand.u32 %v1224, 4294901760
        %1226 = vmatpush.msra.mxu0 %v1225
        %v1227 = vand.u32 %v260, 4294901760
        %v1228 = vsub.f32 %v260, %v1227
        %v1229 = vand.u32 %v1228, 4294901760
        %1230 = vmatpush.msra.mxu0 %v1229
        %v1231 = vand.u32 %v256, 4294901760
        %v1232 = vsub.f32 %v256, %v1231
        %v1233 = vand.u32 %v1232, 4294901760
        %1234 = vmatpush.msra.mxu0 %v1233
        %v1235 = vand.u32 %v252, 4294901760
        %v1236 = vsub.f32 %v252, %v1235
        %v1237 = vand.u32 %v1236, 4294901760
        %1238 = vmatpush.msra.mxu0 %v1237
        %v1239 = vand.u32 %v248, 4294901760
        %v1240 = vsub.f32 %v248, %v1239
        %v1241 = vand.u32 %v1240, 4294901760
        %1242 = vmatpush.msra.mxu0 %v1241
        %v1243 = vand.u32 %v244, 4294901760
        %v1244 = vsub.f32 %v244, %v1243
        %v1245 = vand.u32 %v1244, 4294901760
        %1246 = vmatpush.msra.mxu0 %v1245
        %v1247 = vand.u32 %v240, 4294901760
        %v1248 = vsub.f32 %v240, %v1247
        %v1249 = vand.u32 %v1248, 4294901760
        %1250 = vmatpush.msra.mxu0 %v1249
        %v1251 = vand.u32 %v236, 4294901760
        %v1252 = vsub.f32 %v236, %v1251
        %v1253 = vand.u32 %v1252, 4294901760
        %1254 = vmatpush.msra.mxu0 %v1253
        %v1255 = vand.u32 %v232, 4294901760
        %v1256 = vsub.f32 %v232, %v1255
        %v1257 = vand.u32 %v1256, 4294901760
        %1258 = vmatpush.msra.mxu0 %v1257
        %v1259 = vand.u32 %v228, 4294901760
        %v1260 = vsub.f32 %v228, %v1259
        %v1261 = vand.u32 %v1260, 4294901760
        %1262 = vmatpush.msra.mxu0 %v1261
        %v1263 = vand.u32 %v224, 4294901760
        %v1264 = vsub.f32 %v224, %v1263
        %v1265 = vand.u32 %v1264, 4294901760
        %1266 = vmatpush.msra.mxu0 %v1265
        %v1267 = vand.u32 %v221, 4294901760
        %1268 = vmatmul.f32.gmra.mxu0 %v1267
        %v1269 = vpop.f32.mrf.mxu0
        %v1270 = vadd.f32 %v1201, %v1269
        %1271 = vdwg.mxu0
        %v1272 = vand.u32 %v284, 4294901760
        %1273 = vmatpush.msra.mxu0 %v1272
        %v1274 = vand.u32 %v280, 4294901760
        %1275 = vmatpush.msra.mxu0 %v1274
        %v1276 = vand.u32 %v276, 4294901760
        %1277 = vmatpush.msra.mxu0 %v1276
        %v1278 = vand.u32 %v272, 4294901760
        %1279 = vmatpush.msra.mxu0 %v1278
        %v1280 = vand.u32 %v268, 4294901760
        %1281 = vmatpush.msra.mxu0 %v1280
        %v1282 = vand.u32 %v264, 4294901760
        %1283 = vmatpush.msra.mxu0 %v1282
        %v1284 = vand.u32 %v260, 4294901760
        %1285 = vmatpush.msra.mxu0 %v1284
        %v1286 = vand.u32 %v256, 4294901760
        %1287 = vmatpush.msra.mxu0 %v1286
        %v1288 = vand.u32 %v252, 4294901760
        %1289 = vmatpush.msra.mxu0 %v1288
        %v1290 = vand.u32 %v248, 4294901760
        %1291 = vmatpush.msra.mxu0 %v1290
        %v1292 = vand.u32 %v244, 4294901760
        %1293 = vmatpush.msra.mxu0 %v1292
        %v1294 = vand.u32 %v240, 4294901760
        %1295 = vmatpush.msra.mxu0 %v1294
        %v1296 = vand.u32 %v236, 4294901760
        %1297 = vmatpush.msra.mxu0 %v1296
        %v1298 = vand.u32 %v232, 4294901760
        %1299 = vmatpush.msra.mxu0 %v1298
        %v1300 = vand.u32 %v228, 4294901760
        %1301 = vmatpush.msra.mxu0 %v1300
        %v1302 = vand.u32 %v224, 4294901760
        %1303 = vmatpush.msra.mxu0 %v1302
        %v1304 = vand.u32 %v221, 4294901760
        %1305 = vmatmul.f32.gmra.mxu0 %v1304
        %v1306 = vpop.f32.mrf.mxu0
        %v1307 = vadd.f32 %v1270, %v1306
        %1308 = vdwg.mxu0
        %v1309 = vand.u32 %v285, 4294901760
        %1310 = vmatpush.msra.mxu0 %v1309
        %v1311 = vand.u32 %v281, 4294901760
        %1312 = vmatpush.msra.mxu0 %v1311
        %v1313 = vand.u32 %v277, 4294901760
        %1314 = vmatpush.msra.mxu0 %v1313
        %v1315 = vand.u32 %v273, 4294901760
        %1316 = vmatpush.msra.mxu0 %v1315
        %v1317 = vand.u32 %v269, 4294901760
        %1318 = vmatpush.msra.mxu0 %v1317
        %v1319 = vand.u32 %v265, 4294901760
        %1320 = vmatpush.msra.mxu0 %v1319
        %v1321 = vand.u32 %v261, 4294901760
        %1322 = vmatpush.msra.mxu0 %v1321
        %v1323 = vand.u32 %v257, 4294901760
        %1324 = vmatpush.msra.mxu0 %v1323
        %v1325 = vand.u32 %v253, 4294901760
        %1326 = vmatpush.msra.mxu0 %v1325
        %v1327 = vand.u32 %v249, 4294901760
        %1328 = vmatpush.msra.mxu0 %v1327
        %v1329 = vand.u32 %v245, 4294901760
        %1330 = vmatpush.msra.mxu0 %v1329
        %v1331 = vand.u32 %v241, 4294901760
        %1332 = vmatpush.msra.mxu0 %v1331
        %v1333 = vand.u32 %v237, 4294901760
        %1334 = vmatpush.msra.mxu0 %v1333
        %v1335 = vand.u32 %v233, 4294901760
        %1336 = vmatpush.msra.mxu0 %v1335
        %v1337 = vand.u32 %v229, 4294901760
        %1338 = vmatpush.msra.mxu0 %v1337
        %v1339 = vand.u32 %v225, 4294901760
        %1340 = vmatpush.msra.mxu0 %v1339
        %v1341 = vand.u32 %v221, 4294901760
        %v1342 = vsub.f32 %v221, %v1341
        %v1343 = vand.u32 %v1342, 4294901760
        %v1344 = vsub.f32 %v1342, %v1343
        %v1345 = vand.u32 %v1344, 4294901760
        %1346 = vmatmul.f32.gmra.mxu0 %v1345
        %v1347 = vpop.f32.mrf.mxu0
        %v1348 = vadd.f32 0.0, %v1347
        %1349 = vdwg.mxu0
        %v1350 = vand.u32 %v285, 4294901760
        %v1351 = vsub.f32 %v285, %v1350
        %v1352 = vand.u32 %v1351, 4294901760
        %v1353 = vsub.f32 %v1351, %v1352
        %v1354 = vand.u32 %v1353, 4294901760
        %1355 = vmatpush.msra.mxu0 %v1354
        %v1356 = vand.u32 %v281, 4294901760
        %v1357 = vsub.f32 %v281, %v1356
        %v1358 = vand.u32 %v1357, 4294901760
        %v1359 = vsub.f32 %v1357, %v1358
        %v1360 = vand.u32 %v1359, 4294901760
        %1361 = vmatpush.msra.mxu0 %v1360
        %v1362 = vand.u32 %v277, 4294901760
        %v1363 = vsub.f32 %v277, %v1362
        %v1364 = vand.u32 %v1363, 4294901760
        %v1365 = vsub.f32 %v1363, %v1364
        %v1366 = vand.u32 %v1365, 4294901760
        %1367 = vmatpush.msra.mxu0 %v1366
        %v1368 = vand.u32 %v273, 4294901760
        %v1369 = vsub.f32 %v273, %v1368
        %v1370 = vand.u32 %v1369, 4294901760
        %v1371 = vsub.f32 %v1369, %v1370
        %v1372 = vand.u32 %v1371, 4294901760
        %1373 = vmatpush.msra.mxu0 %v1372
        %v1374 = vand.u32 %v269, 4294901760
        %v1375 = vsub.f32 %v269, %v1374
        %v1376 = vand.u32 %v1375, 4294901760
        %v1377 = vsub.f32 %v1375, %v1376
        %v1378 = vand.u32 %v1377, 4294901760
        %1379 = vmatpush.msra.mxu0 %v1378
        %v1380 = vand.u32 %v265, 4294901760
        %v1381 = vsub.f32 %v265, %v1380
        %v1382 = vand.u32 %v1381, 4294901760
        %v1383 = vsub.f32 %v1381, %v1382
        %v1384 = vand.u32 %v1383, 4294901760
        %1385 = vmatpush.msra.mxu0 %v1384
        %v1386 = vand.u32 %v261, 4294901760
        %v1387 = vsub.f32 %v261, %v1386
        %v1388 = vand.u32 %v1387, 4294901760
        %v1389 = vsub.f32 %v1387, %v1388
        %v1390 = vand.u32 %v1389, 4294901760
        %1391 = vmatpush.msra.mxu0 %v1390
        %v1392 = vand.u32 %v257, 4294901760
        %v1393 = vsub.f32 %v257, %v1392
        %v1394 = vand.u32 %v1393, 4294901760
        %v1395 = vsub.f32 %v1393, %v1394
        %v1396 = vand.u32 %v1395, 4294901760
        %1397 = vmatpush.msra.mxu0 %v1396
        %v1398 = vand.u32 %v253, 4294901760
        %v1399 = vsub.f32 %v253, %v1398
        %v1400 = vand.u32 %v1399, 4294901760
        %v1401 = vsub.f32 %v1399, %v1400
        %v1402 = vand.u32 %v1401, 4294901760
        %1403 = vmatpush.msra.mxu0 %v1402
        %v1404 = vand.u32 %v249, 4294901760
        %v1405 = vsub.f32 %v249, %v1404
        %v1406 = vand.u32 %v1405, 4294901760
        %v1407 = vsub.f32 %v1405, %v1406
        %v1408 = vand.u32 %v1407, 4294901760
        %1409 = vmatpush.msra.mxu0 %v1408
        %v1410 = vand.u32 %v245, 4294901760
        %v1411 = vsub.f32 %v245, %v1410
        %v1412 = vand.u32 %v1411, 4294901760
        %v1413 = vsub.f32 %v1411, %v1412
        %v1414 = vand.u32 %v1413, 4294901760
        %1415 = vmatpush.msra.mxu0 %v1414
        %v1416 = vand.u32 %v241, 4294901760
        %v1417 = vsub.f32 %v241, %v1416
        %v1418 = vand.u32 %v1417, 4294901760
        %v1419 = vsub.f32 %v1417, %v1418
        %v1420 = vand.u32 %v1419, 4294901760
        %1421 = vmatpush.msra.mxu0 %v1420
        %v1422 = vand.u32 %v237, 4294901760
        %v1423 = vsub.f32 %v237, %v1422
        %v1424 = vand.u32 %v1423, 4294901760
        %v1425 = vsub.f32 %v1423, %v1424
        %v1426 = vand.u32 %v1425, 4294901760
        %1427 = vmatpush.msra.mxu0 %v1426
        %v1428 = vand.u32 %v233, 4294901760
        %v1429 = vsub.f32 %v233, %v1428
        %v1430 = vand.u32 %v1429, 4294901760
        %v1431 = vsub.f32 %v1429, %v1430
        %v1432 = vand.u32 %v1431, 4294901760
        %1433 = vmatpush.msra.mxu0 %v1432
        %v1434 = vand.u32 %v229, 4294901760
        %v1435 = vsub.f32 %v229, %v1434
        %v1436 = vand.u32 %v1435, 4294901760
        %v1437 = vsub.f32 %v1435, %v1436
        %v1438 = vand.u32 %v1437, 4294901760
        %1439 = vmatpush.msra.mxu0 %v1438
        %v1440 = vand.u32 %v225, 4294901760
        %v1441 = vsub.f32 %v225, %v1440
        %v1442 = vand.u32 %v1441, 4294901760
        %v1443 = vsub.f32 %v1441, %v1442
        %v1444 = vand.u32 %v1443, 4294901760
        %1445 = vmatpush.msra.mxu0 %v1444
        %v1446 = vand.u32 %v221, 4294901760
        %1447 = vmatmul.f32.gmra.mxu0 %v1446
        %v1448 = vpop.f32.mrf.mxu0
        %v1449 = vadd.f32 %v1348, %v1448
        %1450 = vdwg.mxu0
        %v1451 = vand.u32 %v285, 4294901760
        %v1452 = vsub.f32 %v285, %v1451
        %1453 = vmatpush.msra.mxu0 %v1452
        %v1454 = vand.u32 %v281, 4294901760
        %v1455 = vsub.f32 %v281, %v1454
        %1456 = vmatpush.msra.mxu0 %v1455
        %v1457 = vand.u32 %v277, 4294901760
        %v1458 = vsub.f32 %v277, %v1457
        %1459 = vmatpush.msra.mxu0 %v1458
        %v1460 = vand.u32 %v273, 4294901760
        %v1461 = vsub.f32 %v273, %v1460
        %1462 = vmatpush.msra.mxu0 %v1461
        %v1463 = vand.u32 %v269, 4294901760
        %v1464 = vsub.f32 %v269, %v1463
        %1465 = vmatpush.msra.mxu0 %v1464
        %v1466 = vand.u32 %v265, 4294901760
        %v1467 = vsub.f32 %v265, %v1466
        %1468 = vmatpush.msra.mxu0 %v1467
        %v1469 = vand.u32 %v261, 4294901760
        %v1470 = vsub.f32 %v261, %v1469
        %1471 = vmatpush.msra.mxu0 %v1470
        %v1472 = vand.u32 %v257, 4294901760
        %v1473 = vsub.f32 %v257, %v1472
        %1474 = vmatpush.msra.mxu0 %v1473
        %v1475 = vand.u32 %v253, 4294901760
        %v1476 = vsub.f32 %v253, %v1475
        %1477 = vmatpush.msra.mxu0 %v1476
        %v1478 = vand.u32 %v249, 4294901760
        %v1479 = vsub.f32 %v249, %v1478
        %1480 = vmatpush.msra.mxu0 %v1479
        %v1481 = vand.u32 %v245, 4294901760
        %v1482 = vsub.f32 %v245, %v1481
        %1483 = vmatpush.msra.mxu0 %v1482
        %v1484 = vand.u32 %v241, 4294901760
        %v1485 = vsub.f32 %v241, %v1484
        %1486 = vmatpush.msra.mxu0 %v1485
        %v1487 = vand.u32 %v237, 4294901760
        %v1488 = vsub.f32 %v237, %v1487
        %1489 = vmatpush.msra.mxu0 %v1488
        %v1490 = vand.u32 %v233, 4294901760
        %v1491 = vsub.f32 %v233, %v1490
        %1492 = vmatpush.msra.mxu0 %v1491
        %v1493 = vand.u32 %v229, 4294901760
        %v1494 = vsub.f32 %v229, %v1493
        %1495 = vmatpush.msra.mxu0 %v1494
        %v1496 = vand.u32 %v225, 4294901760
        %v1497 = vsub.f32 %v225, %v1496
        %1498 = vmatpush.msra.mxu0 %v1497
        %v1499 = vand.u32 %v221, 4294901760
        %v1500 = vsub.f32 %v221, %v1499
        %1501 = vmatmul.f32.gmra.mxu0 %v1500
        %v1502 = vpop.f32.mrf.mxu0
        %v1503 = vadd.f32 %v1449, %v1502
        %1504 = vdwg.mxu0
        %v1505 = vand.u32 %v285, 4294901760
        %1506 = vmatpush.msra.mxu0 %v1505
        %v1507 = vand.u32 %v281, 4294901760
        %1508 = vmatpush.msra.mxu0 %v1507
        %v1509 = vand.u32 %v277, 4294901760
        %1510 = vmatpush.msra.mxu0 %v1509
        %v1511 = vand.u32 %v273, 4294901760
        %1512 = vmatpush.msra.mxu0 %v1511
        %v1513 = vand.u32 %v269, 4294901760
        %1514 = vmatpush.msra.mxu0 %v1513
        %v1515 = vand.u32 %v265, 4294901760
        %1516 = vmatpush.msra.mxu0 %v1515
        %v1517 = vand.u32 %v261, 4294901760
        %1518 = vmatpush.msra.mxu0 %v1517
        %v1519 = vand.u32 %v257, 4294901760
        %1520 = vmatpush.msra.mxu0 %v1519
        %v1521 = vand.u32 %v253, 4294901760
        %1522 = vmatpush.msra.mxu0 %v1521
        %v1523 = vand.u32 %v249, 4294901760
        %1524 = vmatpush.msra.mxu0 %v1523
        %v1525 = vand.u32 %v245, 4294901760
        %1526 = vmatpush.msra.mxu0 %v1525
        %v1527 = vand.u32 %v241, 4294901760
        %1528 = vmatpush.msra.mxu0 %v1527
        %v1529 = vand.u32 %v237, 4294901760
        %1530 = vmatpush.msra.mxu0 %v1529
        %v1531 = vand.u32 %v233, 4294901760
        %1532 = vmatpush.msra.mxu0 %v1531
        %v1533 = vand.u32 %v229, 4294901760
        %1534 = vmatpush.msra.mxu0 %v1533
        %v1535 = vand.u32 %v225, 4294901760
        %1536 = vmatpush.msra.mxu0 %v1535
        %v1537 = vand.u32 %v221, 4294901760
        %v1538 = vsub.f32 %v221, %v1537
        %v1539 = vand.u32 %v1538, 4294901760
        %1540 = vmatmul.f32.gmra.mxu0 %v1539
        %v1541 = vpop.f32.mrf.mxu0
        %v1542 = vadd.f32 %v1503, %v1541
        %1543 = vdwg.mxu0
        %v1544 = vand.u32 %v285, 4294901760
        %v1545 = vsub.f32 %v285, %v1544
        %v1546 = vand.u32 %v1545, 4294901760
        %1547 = vmatpush.msra.mxu0 %v1546
        %v1548 = vand.u32 %v281, 4294901760
        %v1549 = vsub.f32 %v281, %v1548
        %v1550 = vand.u32 %v1549, 4294901760
        %1551 = vmatpush.msra.mxu0 %v1550
        %v1552 = vand.u32 %v277, 4294901760
        %v1553 = vsub.f32 %v277, %v1552
        %v1554 = vand.u32 %v1553, 4294901760
        %1555 = vmatpush.msra.mxu0 %v1554
        %v1556 = vand.u32 %v273, 4294901760
        %v1557 = vsub.f32 %v273, %v1556
        %v1558 = vand.u32 %v1557, 4294901760
        %1559 = vmatpush.msra.mxu0 %v1558
        %v1560 = vand.u32 %v269, 4294901760
        %v1561 = vsub.f32 %v269, %v1560
        %v1562 = vand.u32 %v1561, 4294901760
        %1563 = vmatpush.msra.mxu0 %v1562
        %v1564 = vand.u32 %v265, 4294901760
        %v1565 = vsub.f32 %v265, %v1564
        %v1566 = vand.u32 %v1565, 4294901760
        %1567 = vmatpush.msra.mxu0 %v1566
        %v1568 = vand.u32 %v261, 4294901760
        %v1569 = vsub.f32 %v261, %v1568
        %v1570 = vand.u32 %v1569, 4294901760
        %1571 = vmatpush.msra.mxu0 %v1570
        %v1572 = vand.u32 %v257, 4294901760
        %v1573 = vsub.f32 %v257, %v1572
        %v1574 = vand.u32 %v1573, 4294901760
        %1575 = vmatpush.msra.mxu0 %v1574
        %v1576 = vand.u32 %v253, 4294901760
        %v1577 = vsub.f32 %v253, %v1576
        %v1578 = vand.u32 %v1577, 4294901760
        %1579 = vmatpush.msra.mxu0 %v1578
        %v1580 = vand.u32 %v249, 4294901760
        %v1581 = vsub.f32 %v249, %v1580
        %v1582 = vand.u32 %v1581, 4294901760
        %1583 = vmatpush.msra.mxu0 %v1582
        %v1584 = vand.u32 %v245, 4294901760
        %v1585 = vsub.f32 %v245, %v1584
        %v1586 = vand.u32 %v1585, 4294901760
        %1587 = vmatpush.msra.mxu0 %v1586
        %v1588 = vand.u32 %v241, 4294901760
        %v1589 = vsub.f32 %v241, %v1588
        %v1590 = vand.u32 %v1589, 4294901760
        %1591 = vmatpush.msra.mxu0 %v1590
        %v1592 = vand.u32 %v237, 4294901760
        %v1593 = vsub.f32 %v237, %v1592
        %v1594 = vand.u32 %v1593, 4294901760
        %1595 = vmatpush.msra.mxu0 %v1594
        %v1596 = vand.u32 %v233, 4294901760
        %v1597 = vsub.f32 %v233, %v1596
        %v1598 = vand.u32 %v1597, 4294901760
        %1599 = vmatpush.msra.mxu0 %v1598
        %v1600 = vand.u32 %v229, 4294901760
        %v1601 = vsub.f32 %v229, %v1600
        %v1602 = vand.u32 %v1601, 4294901760
        %1603 = vmatpush.msra.mxu0 %v1602
        %v1604 = vand.u32 %v225, 4294901760
        %v1605 = vsub.f32 %v225, %v1604
        %v1606 = vand.u32 %v1605, 4294901760
        %1607 = vmatpush.msra.mxu0 %v1606
        %v1608 = vand.u32 %v221, 4294901760
        %1609 = vmatmul.f32.gmra.mxu0 %v1608
        %v1610 = vpop.f32.mrf.mxu0
        %v1611 = vadd.f32 %v1542, %v1610
        %1612 = vdwg.mxu0
        %v1613 = vand.u32 %v285, 4294901760
        %1614 = vmatpush.msra.mxu0 %v1613
        %v1615 = vand.u32 %v281, 4294901760
        %1616 = vmatpush.msra.mxu0 %v1615
        %v1617 = vand.u32 %v277, 4294901760
        %1618 = vmatpush.msra.mxu0 %v1617
        %v1619 = vand.u32 %v273, 4294901760
        %1620 = vmatpush.msra.mxu0 %v1619
        %v1621 = vand.u32 %v269, 4294901760
        %1622 = vmatpush.msra.mxu0 %v1621
        %v1623 = vand.u32 %v265, 4294901760
        %1624 = vmatpush.msra.mxu0 %v1623
        %v1625 = vand.u32 %v261, 4294901760
        %1626 = vmatpush.msra.mxu0 %v1625
        %v1627 = vand.u32 %v257, 4294901760
        %1628 = vmatpush.msra.mxu0 %v1627
        %v1629 = vand.u32 %v253, 4294901760
        %1630 = vmatpush.msra.mxu0 %v1629
        %v1631 = vand.u32 %v249, 4294901760
        %1632 = vmatpush.msra.mxu0 %v1631
        %v1633 = vand.u32 %v245, 4294901760
        %1634 = vmatpush.msra.mxu0 %v1633
        %v1635 = vand.u32 %v241, 4294901760
        %1636 = vmatpush.msra.mxu0 %v1635
        %v1637 = vand.u32 %v237, 4294901760
        %1638 = vmatpush.msra.mxu0 %v1637
        %v1639 = vand.u32 %v233, 4294901760
        %1640 = vmatpush.msra.mxu0 %v1639
        %v1641 = vand.u32 %v229, 4294901760
        %1642 = vmatpush.msra.mxu0 %v1641
        %v1643 = vand.u32 %v225, 4294901760
        %1644 = vmatpush.msra.mxu0 %v1643
        %v1645 = vand.u32 %v221, 4294901760
        %1646 = vmatmul.f32.gmra.mxu0 %v1645
        %v1647 = vpop.f32.mrf.mxu0
        %v1648 = vadd.f32 %v1611, %v1647
        %1649 = vdwg.mxu0
        %v1650 = vld [vmem:[#allocation2] ss:$8 sm:$0xf]
        %s1651 = scalar_lea.vmem [#allocation2], 1
        %v1652 = vld [vmem:[%s1651] ss:$8 sm:$0xf]
        %s1653 = scalar_lea.vmem [#allocation2], 2
        %v1654 = vld [vmem:[%s1653] ss:$8 sm:$0xf]
        %s1655 = scalar_lea.vmem [#allocation2], 3
        %v1656 = vld [vmem:[%s1655] ss:$8 sm:$0xf]
        %v1658 = vperm.slane %v1656, 0
        %v1659 = vperm.slane %v1656, 1
        %v1660 = vperm.slane %v1656, 2
        %v1661 = vperm.slane %v1656, 3
        %v1666 = vmul.f32 %v625, %v1658
        %v1667 = vmul.f32 %v966, %v1659
        %v1668 = vmul.f32 %v1307, %v1660
        %v1669 = vmul.f32 %v1648, %v1661
        %v1671 = vperm.slane %v1654, 0
        %v1672 = vperm.slane %v1654, 1
        %v1673 = vperm.slane %v1654, 2
        %v1674 = vperm.slane %v1654, 3
        %v1679 = vadd.f32 %v1671, %v1666
        %v1680 = vadd.f32 %v1672, %v1667
        %v1681 = vadd.f32 %v1673, %v1668
        %v1682 = vadd.f32 %v1674, %v1669
        %v1684 = vperm.slane %v1650, 0
        %v1685 = vperm.slane %v1650, 1
        %v1686 = vperm.slane %v1650, 2
        %v1687 = vperm.slane %v1650, 3
        %v1692 = vmul.f32 %v625, %v1684
        %v1693 = vmul.f32 %v966, %v1685
        %v1694 = vmul.f32 %v1307, %v1686
        %v1695 = vmul.f32 %v1648, %v1687
        %v1696 = vadd.f32 %v1692, 1.0
        %v1697 = vadd.f32 %v1693, 1.0
        %v1698 = vadd.f32 %v1694, 1.0
        %v1699 = vadd.f32 %v1695, 1.0
        %v1701 = vperm.slane %v1652, 0
        %v1702 = vperm.slane %v1652, 1
        %v1703 = vperm.slane %v1652, 2
        %v1704 = vperm.slane %v1652, 3
        %v1709 = vmul.f32 %v625, %v1701
        %v1710 = vmul.f32 %v966, %v1702
        %v1711 = vmul.f32 %v1307, %v1703
        %v1712 = vmul.f32 %v1648, %v1704
        %v1713 = vadd.f32 %v1709, 1.0
        %v1714 = vadd.f32 %v1710, 1.0
        %v1715 = vadd.f32 %v1711, 1.0
        %v1716 = vadd.f32 %v1712, 1.0
        %v1717 = vmul.f32 %v1696, %v1713
        %v1718 = vmul.f32 %v1697, %v1714
        %v1719 = vmul.f32 %v1698, %v1715
        %v1720 = vmul.f32 %v1699, %v1716
        %v1721 = vrcp.pop %v1717
        %v1722 = vmul.f32 %v1717, %v1721
        %v1723 = vsub.f32 1.0, %v1722
        %v1724 = vmul.f32 %v1721, %v1723
        %v1725 = vadd.f32 %v1721, %v1724
        %vm1726 = vweird.f32 %v1717
        %vm1727 = vweird.f32 %v1721
        %vm1728 = vmor %vm1726, %vm1727
        %v1729 = vsel %vm1728, %v1721, %v1725
        %v1730 = vand.u32 2147483647, %v1717
        %vm1731 = vcmp.eq.f32.partialorder %v1730, 8.507059e+37
        %v1732 = vand.u32 %v1717, 2147483648
        %v1733 = vor.u32 1.1754944e-38, %v1732
        %v1734 = vsel %vm1731, %v1733, %v1729
        %v1735 = vmul.f32 %v1679, %v1734
        %v1736 = vrcp.pop %v1718
        %v1737 = vmul.f32 %v1718, %v1736
        %v1738 = vsub.f32 1.0, %v1737
        %v1739 = vmul.f32 %v1736, %v1738
        %v1740 = vadd.f32 %v1736, %v1739
        %vm1741 = vweird.f32 %v1718
        %vm1742 = vweird.f32 %v1736
        %vm1743 = vmor %vm1741, %vm1742
        %v1744 = vsel %vm1743, %v1736, %v1740
        %v1745 = vand.u32 2147483647, %v1718
        %vm1746 = vcmp.eq.f32.partialorder %v1745, 8.507059e+37
        %v1747 = vand.u32 %v1718, 2147483648
        %v1748 = vor.u32 1.1754944e-38, %v1747
        %v1749 = vsel %vm1746, %v1748, %v1744
        %v1750 = vmul.f32 %v1680, %v1749
        %v1751 = vrcp.pop %v1719
        %v1752 = vmul.f32 %v1719, %v1751
        %v1753 = vsub.f32 1.0, %v1752
        %v1754 = vmul.f32 %v1751, %v1753
        %v1755 = vadd.f32 %v1751, %v1754
        %vm1756 = vweird.f32 %v1719
        %vm1757 = vweird.f32 %v1751
        %vm1758 = vmor %vm1756, %vm1757
        %v1759 = vsel %vm1758, %v1751, %v1755
        %v1760 = vand.u32 2147483647, %v1719
        %vm1761 = vcmp.eq.f32.partialorder %v1760, 8.507059e+37
        %v1762 = vand.u32 %v1719, 2147483648
        %v1763 = vor.u32 1.1754944e-38, %v1762
        %v1764 = vsel %vm1761, %v1763, %v1759
        %v1765 = vmul.f32 %v1681, %v1764
        %v1766 = vrcp.pop %v1720
        %v1767 = vmul.f32 %v1720, %v1766
        %v1768 = vsub.f32 1.0, %v1767
        %v1769 = vmul.f32 %v1766, %v1768
        %v1770 = vadd.f32 %v1766, %v1769
        %vm1771 = vweird.f32 %v1720
        %vm1772 = vweird.f32 %v1766
        %vm1773 = vmor %vm1771, %vm1772
        %v1774 = vsel %vm1773, %v1766, %v1770
        %v1775 = vand.u32 2147483647, %v1720
        %vm1776 = vcmp.eq.f32.partialorder %v1775, 8.507059e+37
        %v1777 = vand.u32 %v1720, 2147483648
        %v1778 = vor.u32 1.1754944e-38, %v1777
        %v1779 = vsel %vm1776, %v1778, %v1774
        %v1780 = vmul.f32 %v1682, %v1779
        %1781 = vst [vmem:[%s216] sm:$0xff] %v1735
        %1782 = vst [vmem:[%s216 + $0x8] sm:$0xff] %v1750
        %1783 = vst [vmem:[%s216 + $0x10] sm:$0xff] %v1765
        %1784 = vst [vmem:[%s216 + $0x18] sm:$0xff] %v1780
        %s1785 = sand.u32 %s95, 1
        %s1786 = scalar_lea.sflag [#allocation4], %s1785
        %s1787 = sand.u32 %s95, 1
        %s1788 = smul.addr %s1787, 32
        %s1789 = scalar_lea.vmem [#allocation8], %s1788
        // Predicated region
        $region45: #{tpu_custom_call.1} parent=31 // pred_check
          %p1790 = pneg %p105
        $region46: #{tpu_custom_call.1} parent=31 // pred_check_branch
          %1792 = sbr.rel (%p1790) target = $region48
        $region47: #{tpu_custom_call.1} parent=31 // pred_region
          %1794 = vsyncadd %s1786, 0
          %s1795 = smul.addr %s19, 4
          %s1796 = smul.addr %s1795, 8
          %s1797 = scalar_lea.hbm %s3, %s1796
          %s1799 = sshll.u32 %s1789, 4
          %s1800 = int_to_ptr.vmem [resolvable:$true] %s1799
          %s1801 = sshll.u32 %s1797, 4
          %s1802 = int_to_ptr.hbm [resolvable:$true] %s1801
          %1804 = dma.vmem_to_hbm [thread:$0]  %s1800, 512, %s1802, %s1786
        $region48: #{tpu_custom_call.1} parent=31 // pred_fallthru
          _
      $region32: #{tpu_custom_call.1} parent=5 // pred_fallthru
        _
      %p1805 = scmp.le.s32.totalorder 2, %s14
      // Predicated region
      $region49: #{tpu_custom_call.1} parent=5 // pred_check
        %p1806 = pneg %p1805
      $region50: #{tpu_custom_call.1} parent=5 // pred_check_branch
        %1808 = sbr.rel (%p1806) target = $region52
      $region51: #{tpu_custom_call.1} parent=5 // pred_region
        %s1809 = ssub.s32 %s14, 2
        // Predicated region
        $region53: #{tpu_custom_call.1} parent=51 // pred_check
          %p1810 = pneg %p111
        $region54: #{tpu_custom_call.1} parent=51 // pred_check_branch
          %1812 = sbr.rel (%p1810) target = $region56
        $region55: #{tpu_custom_call.1} parent=51 // pred_region
          %s1813 = sand.u32 %s96, 1
          %s1814 = scalar_lea.sflag [#allocation4], %s1813
          %s1815 = sand.u32 %s96, 1
          %s1816 = smul.addr %s1815, 32
          %s1817 = scalar_lea.vmem [#allocation8], %s1816
          %1819 = dma.done %s1814, 512
        $region56: #{tpu_custom_call.1} parent=51 // pred_fallthru
          _
      $region52: #{tpu_custom_call.1} parent=5 // pred_fallthru
        _
    $region6: #{tpu_custom_call.1} parent=1 // loop_footer
      %s18 = sadd.s32 1, %s14
    $region7: #{tpu_custom_call.1} parent=1 // loop_footer_branch
      %13 = sbr.rel target = $region3
    $region8: #{tpu_custom_call.1} parent=1 // loop_exit
      _
    %1820 = vsyncpa [#allocation3], 1
    %s1821 = scalar_lea.sflag [#allocation3], 1
    %1822 = vsyncpa %s1821, 1
    %1823 = vsyncpa [#allocation6], 1
    %1824 = vsyncpa [#allocation4], 1
    %s1825 = scalar_lea.sflag [#allocation4], 1
    %1826 = vsyncpa %s1825, 1

</llo_original>
